<compile_context>
chip_gen: v5e
topology: v5e:2x2
jax: 0.10.0
libtpu: 0.0.40
codegen_flags: <defaults>
</compile_context>

<pallas_src>
import math

import jax
import jax.numpy as jnp
from jax import lax
from jax.experimental import pallas as pl
from jax.experimental.pallas import tpu as pltpu

# ----------------------------- config (small) ------------------------------
VOCAB_SIZE  = 64
EMB_DIM     = 32
HID_DIM     = 32
NUM_LAYERS  = 2
DROPOUT     = 0.0          # eval-mode forward: dropout is identity
BATCH       = 2
SEQ_LEN     = 8

_VMEM = pl.BlockSpec(memory_space=pltpu.MemorySpace.VMEM)


def _round_up(x, m):
    return ((x + m - 1) // m) * m


# ----------------------------- fused Pallas kernel -------------------------
def _make_fused_kernel(num_layers, b_pad, seq_len, hid_dim, vocab):
    """Builds the fused forward kernel for fixed static shapes."""
    H = hid_dim
    TBp = seq_len * b_pad

    def kernel(*refs):
        base = 2 + 3 * num_layers
        ids_ref, emb_ref = refs[0], refs[1]
        lstm_w = refs[2:base]                     # per layer: wih_t, whh_t, b
        h0_ref, c0_ref, fcw_ref, fcb_ref = refs[base:base + 4]
        logits_ref, hT_ref, cT_ref = refs[base + 4:base + 7]
        y_ref = refs[base + 7]                    # (TBp, H) VMEM scratch

        # ---- embedding lookup as an exact one-hot matmul (MXU) ----
        ids = ids_ref[...]                                        # (TBp, 1) i32
        iota = lax.broadcasted_iota(jnp.int32, (TBp, vocab), 1)
        onehot = (iota == ids).astype(jnp.float32)                # (TBp, V)
        x = jnp.dot(onehot, emb_ref[...],
                    preferred_element_type=jnp.float32)           # (TBp, E)
        # dropout: identity in eval mode.  TODO(synk): training-mode dropout.

        for l in range(num_layers):
            wih = lstm_w[3 * l + 0][...]                          # (D_in, 4H)
            whh = lstm_w[3 * l + 1][...]                          # (H, 4H)
            b   = lstm_w[3 * l + 2][...]                          # (1, 4H)

            # Hoisted input projection: one MXU matmul for all timesteps.
            gates_x = jnp.dot(x, wih,
                              preferred_element_type=jnp.float32) + b  # (TBp,4H)

            h = h0_ref[l]                                         # (Bp, H)
            c = c0_ref[l]
            for t in range(seq_len):                              # static unroll
                gx = gates_x[t * b_pad:(t + 1) * b_pad, :]        # (Bp, 4H)
                gates = gx + jnp.dot(h, whh,
                                     preferred_element_type=jnp.float32)
                # Full-width transcendentals on the EUP, slice afterwards.
                sg = jax.nn.sigmoid(gates)
                tg = jnp.tanh(gates)
                i_g = sg[:, 0 * H:1 * H]
                f_g = sg[:, 1 * H:2 * H]
                g_g = tg[:, 2 * H:3 * H]
                o_g = sg[:, 3 * H:4 * H]
                c = f_g * c + i_g * g_g
                h = o_g * jnp.tanh(c)
                y_ref[t * b_pad:(t + 1) * b_pad, :] = h
            hT_ref[l] = h
            cT_ref[l] = c
            x = y_ref[...]                        # next layer's input slab
            # inter-layer LSTM dropout: identity in eval mode.

        # ---- final FC, lane-dense output (V padded to 128) ----
        logits_ref[...] = (jnp.dot(x, fcw_ref[...],
                                   preferred_element_type=jnp.float32)
                           + fcb_ref[...])

    return kernel


# ----------------------------- model wrapper -------------------------------
def init_params(key, vocab_size, emb_dim, hid_dim, num_layers):
    init_range_emb = 0.1
    init_range_other = 1.0 / math.sqrt(hid_dim)
    keys = jax.random.split(key, 3 + 4 * num_layers)
    params = {}
    params["embedding"] = jax.random.uniform(
        keys[0], (vocab_size, emb_dim), jnp.float32,
        minval=-init_range_emb, maxval=init_range_other)
    params["fc_w"] = jax.random.uniform(
        keys[1], (vocab_size, hid_dim), jnp.float32,
        minval=-init_range_other, maxval=init_range_other)
    params["fc_b"] = jnp.zeros((vocab_size,), jnp.float32)
    params["lstm"] = []
    for l in range(num_layers):
        d_in = emb_dim if l == 0 else hid_dim
        k_ih, k_hh, k_bih, k_bhh = keys[3 + 4 * l: 3 + 4 * (l + 1)]
        layer = {
            "w_ih": jax.random.uniform(k_ih, (4 * hid_dim, d_in), jnp.float32,
                                       minval=-init_range_other,
                                       maxval=init_range_other),
            "w_hh": jax.random.uniform(k_hh, (4 * hid_dim, hid_dim),
                                       jnp.float32,
                                       minval=-init_range_other,
                                       maxval=init_range_other),
            "b_ih": jax.random.uniform(k_bih, (4 * hid_dim,), jnp.float32,
                                       minval=-init_range_other,
                                       maxval=init_range_other),
            "b_hh": jax.random.uniform(k_bhh, (4 * hid_dim,), jnp.float32,
                                       minval=-init_range_other,
                                       maxval=init_range_other),
        }
        params["lstm"].append(layer)
    return params


def prepare_params(params):
    """One-time weight prep: transpose + pad so the per-call forward does no
    weight layout work (was previously done every forward)."""
    vocab, _hid = params["fc_w"].shape
    v_pad = _round_up(vocab, 128)
    prep = {
        "embedding": params["embedding"],                           # (V, E)
        "fc_w_pad": jnp.pad(jnp.transpose(params["fc_w"]),
                            ((0, 0), (0, v_pad - vocab))),          # (H, Vp)
        "fc_b_pad": jnp.pad(params["fc_b"],
                            (0, v_pad - vocab)).reshape(1, v_pad),  # (1, Vp)
        "lstm": [],
    }
    for layer in params["lstm"]:
        prep["lstm"].append({
            "wih_t": jnp.transpose(layer["w_ih"]),                  # (D_in, 4H)
            "whh_t": jnp.transpose(layer["w_hh"]),                  # (H, 4H)
            "b": (layer["b_ih"] + layer["b_hh"]).reshape(1, -1),    # (1, 4H)
        })
    return prep


def init_hidden(batch_size, num_layers, hid_dim):
    h = jnp.zeros((num_layers, batch_size, hid_dim), jnp.float32)
    c = jnp.zeros((num_layers, batch_size, hid_dim), jnp.float32)
    return h, c


def lstm_lm_forward(prep, src, hidden):
    """Equivalent of LSTMLanguageModel.forward (eval mode).

    src    : int32 (B, T)
    hidden : (h, c) each (num_layers, B, H)
    returns: (prediction (B, T, V), (h_n, c_n))
    """
    h0, c0 = hidden
    B, T = src.shape
    L, _, H = h0.shape
    V, _E = prep["embedding"].shape
    Vp = prep["fc_w_pad"].shape[1]
    Bp = _round_up(B, 8)                      # sublane-dense batch padding

    # Time-major, batch-padded token ids (padded rows use id 0, discarded).
    ids = jnp.zeros((T, Bp), jnp.int32).at[:, :B].set(src.T).reshape(T * Bp, 1)
    h0p = jnp.pad(h0, ((0, 0), (0, Bp - B), (0, 0)))
    c0p = jnp.pad(c0, ((0, 0), (0, Bp - B), (0, 0)))

    flat_ins = [ids, prep["embedding"]]
    for lw in prep["lstm"]:
        flat_ins += [lw["wih_t"], lw["whh_t"], lw["b"]]
    flat_ins += [h0p, c0p, prep["fc_w_pad"], prep["fc_b_pad"]]

    kernel = _make_fused_kernel(L, Bp, T, H, V)
    logits_pad, hTp, cTp = pl.pallas_call(
        kernel,
        out_shape=(jax.ShapeDtypeStruct((T * Bp, Vp), jnp.float32),
                   jax.ShapeDtypeStruct((L, Bp, H), jnp.float32),
                   jax.ShapeDtypeStruct((L, Bp, H), jnp.float32)),
        in_specs=[_VMEM] * len(flat_ins),
        out_specs=(_VMEM, _VMEM, _VMEM),
        scratch_shapes=[pltpu.VMEM((T * Bp, H), jnp.float32)],
    )(*flat_ins)

    prediction = (logits_pad.reshape(T, Bp, Vp)[:, :B, :V]
                  .transpose(1, 0, 2))                       # (B, T, V)
    return prediction, (hTp[:, :B, :], cTp[:, :B, :])


# ------------------------- pure-JAX reference check ------------------------
def _reference_forward(params, src, hidden):
    h0_all, c0_all = hidden
    emb = params["embedding"][src]
    x = emb  # (B, T, E)
    H = HID_DIM
    hs, cs = [], []
    for l, layer in enumerate(params["lstm"]):
        wih, whh = layer["w_ih"], layer["w_hh"]
        b = layer["b_ih"] + layer["b_hh"]
        h, c = h0_all[l], c0_all[l]
        outs = []
        for t in range(x.shape[1]):
            gates = x[:, t, :] @ wih.T + h @ whh.T + b
            i_g = jax.nn.sigmoid(gates[:, 0 * H:1 * H])
            f_g = jax.nn.sigmoid(gates[:, 1 * H:2 * H])
            g_g = jnp.tanh(gates[:, 2 * H:3 * H])
            o_g = jax.nn.sigmoid(gates[:, 3 * H:4 * H])
            c = f_g * c + i_g * g_g
            h = o_g * jnp.tanh(c)
            outs.append(h)
        x = jnp.stack(outs, axis=1)
        hs.append(h)
        cs.append(c)
    pred = x @ params["fc_w"].T + params["fc_b"]
    return pred, (jnp.stack(hs), jnp.stack(cs))


# ----------------------------------- main -----------------------------------
if __name__ == "__main__":
    key = jax.random.PRNGKey(0)
    k_params, k_src = jax.random.split(key)

    params = init_params(k_params, VOCAB_SIZE, EMB_DIM, HID_DIM, NUM_LAYERS)
    prep = prepare_params(params)
    src = jax.random.randint(k_src, (BATCH, SEQ_LEN), 0, VOCAB_SIZE,
                             dtype=jnp.int32)
    hidden = init_hidden(BATCH, NUM_LAYERS, HID_DIM)

    forward = jax.jit(lstm_lm_forward)
    pred, (h_n, c_n) = forward(prep, src, hidden)
    jax.block_until_ready((pred, h_n, c_n))

    # Sanity check against a pure-JAX reference implementation.
    pred_ref, (h_ref, c_ref) = _reference_forward(params, src, hidden)
    assert pred.shape == (BATCH, SEQ_LEN, VOCAB_SIZE)
    assert h_n.shape == (NUM_LAYERS, BATCH, HID_DIM)
    assert c_n.shape == (NUM_LAYERS, BATCH, HID_DIM)
    assert jnp.allclose(pred, pred_ref, atol=1e-5, rtol=1e-5)
    assert jnp.allclose(h_n, h_ref, atol=1e-5, rtol=1e-5)
    assert jnp.allclose(c_n, c_ref, atol=1e-5, rtol=1e-5)

    print("KERNEL_OK")
</pallas_src>

<mosaic_0001>
module attributes {stable_mosaic.version = 11 : i64} {
  func.func @kernel(%arg0: memref<64x1xi32, #tpu.memory_space<vmem>>, %arg1: memref<64x32xf32, #tpu.memory_space<vmem>>, %arg2: memref<32x128xf32, #tpu.memory_space<vmem>>, %arg3: memref<32x128xf32, #tpu.memory_space<vmem>>, %arg4: memref<1x128xf32, #tpu.memory_space<vmem>>, %arg5: memref<32x128xf32, #tpu.memory_space<vmem>>, %arg6: memref<32x128xf32, #tpu.memory_space<vmem>>, %arg7: memref<1x128xf32, #tpu.memory_space<vmem>>, %arg8: memref<2x8x32xf32, #tpu.memory_space<vmem>>, %arg9: memref<2x8x32xf32, #tpu.memory_space<vmem>>, %arg10: memref<32x128xf32, #tpu.memory_space<vmem>>, %arg11: memref<1x128xf32, #tpu.memory_space<vmem>>, %arg12: memref<64x128xf32, #tpu.memory_space<vmem>>, %arg13: memref<2x8x32xf32, #tpu.memory_space<vmem>>, %arg14: memref<2x8x32xf32, #tpu.memory_space<vmem>>, %arg15: memref<64x32xf32, #tpu.memory_space<vmem>>) attributes {dimension_semantics = [], scalar_prefetch = 0 : i64, scratch_operands = 1 : i64, tpu.core_type = #tpu.core_type<tc>} {
    %c0 = arith.constant 0 : index
    %c0_0 = arith.constant 0 : index
    %0 = vector.load %arg0[%c0, %c0_0] : memref<64x1xi32, #tpu.memory_space<vmem>>, vector<64x1xi32>
    %1 = tpu.iota {dimensions = array<i32: 1>} : vector<64x64xi32>
    %2 = vector.broadcast %0 : vector<64x1xi32> to vector<64x64xi32>
    %3 = arith.cmpi eq, %1, %2 : vector<64x64xi32>
    %4 = arith.extui %3 : vector<64x64xi1> to vector<64x64xi32>
    %5 = arith.sitofp %4 : vector<64x64xi32> to vector<64x64xf32>
    %c0_1 = arith.constant 0 : index
    %c0_2 = arith.constant 0 : index
    %6 = vector.load %arg1[%c0_1, %c0_2] : memref<64x32xf32, #tpu.memory_space<vmem>>, vector<64x32xf32>
    %cst = arith.constant dense<0.000000e+00> : vector<64x32xf32>
    %7 = tpu.matmul %5, %6, %cst {dimension_numbers = #tpu.dot_dimension_numbers<[1], [0], [0], [1], [0, 0, 1, 1], [], []>} : vector<64x64xf32>, vector<64x32xf32>, vector<64x32xf32> -> vector<64x32xf32>
    %c0_3 = arith.constant 0 : index
    %c0_4 = arith.constant 0 : index
    %8 = vector.load %arg2[%c0_3, %c0_4] : memref<32x128xf32, #tpu.memory_space<vmem>>, vector<32x128xf32>
    %c0_5 = arith.constant 0 : index
    %c0_6 = arith.constant 0 : index
    %9 = vector.load %arg3[%c0_5, %c0_6] : memref<32x128xf32, #tpu.memory_space<vmem>>, vector<32x128xf32>
    %c0_7 = arith.constant 0 : index
    %c0_8 = arith.constant 0 : index
    %10 = vector.load %arg4[%c0_7, %c0_8] : memref<1x128xf32, #tpu.memory_space<vmem>>, vector<1x128xf32>
    %cst_9 = arith.constant dense<0.000000e+00> : vector<64x128xf32>
    %11 = tpu.matmul %7, %8, %cst_9 {dimension_numbers = #tpu.dot_dimension_numbers<[1], [0], [0], [1], [0, 0, 1, 1], [], []>} : vector<64x32xf32>, vector<32x128xf32>, vector<64x128xf32> -> vector<64x128xf32>
    %12 = vector.broadcast %10 : vector<1x128xf32> to vector<64x128xf32>
    %13 = arith.addf %11, %12 : vector<64x128xf32>
    %c0_10 = arith.constant 0 : index
    %c0_11 = arith.constant 0 : index
    %c0_12 = arith.constant 0 : index
    %14 = vector.load %arg8[%c0_10, %c0_11, %c0_12] : memref<2x8x32xf32, #tpu.memory_space<vmem>>, vector<1x8x32xf32>
    %15 = vector.shape_cast %14 : vector<1x8x32xf32> to vector<8x32xf32>
    %c0_13 = arith.constant 0 : index
    %c0_14 = arith.constant 0 : index
    %c0_15 = arith.constant 0 : index
    %16 = vector.load %arg9[%c0_13, %c0_14, %c0_15] : memref<2x8x32xf32, #tpu.memory_space<vmem>>, vector<1x8x32xf32>
    %17 = vector.shape_cast %16 : vector<1x8x32xf32> to vector<8x32xf32>
    %18 = vector.extract_strided_slice %13 {offsets = [0, 0], sizes = [8, 128], strides = [1, 1]} : vector<64x128xf32> to vector<8x128xf32>
    %cst_16 = arith.constant dense<0.000000e+00> : vector<8x128xf32>
    %19 = tpu.matmul %15, %9, %cst_16 {dimension_numbers = #tpu.dot_dimension_numbers<[1], [0], [0], [1], [0, 0, 1, 1], [], []>} : vector<8x32xf32>, vector<32x128xf32>, vector<8x128xf32> -> vector<8x128xf32>
    %20 = arith.addf %18, %19 : vector<8x128xf32>
    %21 = arith.negf %20 : vector<8x128xf32>
    %22 = math.exp %21 : vector<8x128xf32>
    %cst_17 = arith.constant 1.000000e+00 : f32
    %23 = vector.broadcast %cst_17 : f32 to vector<8x128xf32>
    %24 = arith.addf %23, %22 : vector<8x128xf32>
    %25 = arith.divf %23, %24 : vector<8x128xf32>
    %26 = math.tanh %20 : vector<8x128xf32>
    %27 = vector.extract_strided_slice %25 {offsets = [0, 0], sizes = [8, 32], strides = [1, 1]} : vector<8x128xf32> to vector<8x32xf32>
    %28 = vector.extract_strided_slice %25 {offsets = [0, 32], sizes = [8, 32], strides = [1, 1]} : vector<8x128xf32> to vector<8x32xf32>
    %29 = vector.extract_strided_slice %26 {offsets = [0, 64], sizes = [8, 32], strides = [1, 1]} : vector<8x128xf32> to vector<8x32xf32>
    %30 = vector.extract_strided_slice %25 {offsets = [0, 96], sizes = [8, 32], strides = [1, 1]} : vector<8x128xf32> to vector<8x32xf32>
    %31 = arith.mulf %28, %17 : vector<8x32xf32>
    %32 = arith.mulf %27, %29 : vector<8x32xf32>
    %33 = arith.addf %31, %32 : vector<8x32xf32>
    %34 = math.tanh %33 : vector<8x32xf32>
    %35 = arith.mulf %30, %34 : vector<8x32xf32>
    %c0_18 = arith.constant 0 : index
    %c0_19 = arith.constant 0 : index
    %36 = vector.load %arg15[%c0_18, %c0_19] : memref<64x32xf32, #tpu.memory_space<vmem>>, vector<8x32xf32>
    tpu.vector_store %arg15[%c0_18, %c0_19], %35 {strides = array<i32>} : memref<64x32xf32, #tpu.memory_space<vmem>>, vector<8x32xf32>,
    %37 = vector.extract_strided_slice %13 {offsets = [8, 0], sizes = [8, 128], strides = [1, 1]} : vector<64x128xf32> to vector<8x128xf32>
    %cst_20 = arith.constant dense<0.000000e+00> : vector<8x128xf32>
    %38 = tpu.matmul %35, %9, %cst_20 {dimension_numbers = #tpu.dot_dimension_numbers<[1], [0], [0], [1], [0, 0, 1, 1], [], []>} : vector<8x32xf32>, vector<32x128xf32>, vector<8x128xf32> -> vector<8x128xf32>
    %39 = arith.addf %37, %38 : vector<8x128xf32>
    %40 = arith.negf %39 : vector<8x128xf32>
    %41 = math.exp %40 : vector<8x128xf32>
    %cst_21 = arith.constant 1.000000e+00 : f32
    %42 = vector.broadcast %cst_21 : f32 to vector<8x128xf32>
    %43 = arith.addf %42, %41 : vector<8x128xf32>
    %44 = arith.divf %42, %43 : vector<8x128xf32>
    %45 = math.tanh %39 : vector<8x128xf32>
    %46 = vector.extract_strided_slice %44 {offsets = [0, 0], sizes = [8, 32], strides = [1, 1]} : vector<8x128xf32> to vector<8x32xf32>
    %47 = vector.extract_strided_slice %44 {offsets = [0, 32], sizes = [8, 32], strides = [1, 1]} : vector<8x128xf32> to vector<8x32xf32>
    %48 = vector.extract_strided_slice %45 {offsets = [0, 64], sizes = [8, 32], strides = [1, 1]} : vector<8x128xf32> to vector<8x32xf32>
    %49 = vector.extract_strided_slice %44 {offsets = [0, 96], sizes = [8, 32], strides = [1, 1]} : vector<8x128xf32> to vector<8x32xf32>
    %50 = arith.mulf %47, %33 : vector<8x32xf32>
    %51 = arith.mulf %46, %48 : vector<8x32xf32>
    %52 = arith.addf %50, %51 : vector<8x32xf32>
    %53 = math.tanh %52 : vector<8x32xf32>
    %54 = arith.mulf %49, %53 : vector<8x32xf32>
    %c8 = arith.constant 8 : index
    %c0_22 = arith.constant 0 : index
    %55 = vector.load %arg15[%c8, %c0_22] : memref<64x32xf32, #tpu.memory_space<vmem>>, vector<8x32xf32>
    tpu.vector_store %arg15[%c8, %c0_22], %54 {strides = array<i32>} : memref<64x32xf32, #tpu.memory_space<vmem>>, vector<8x32xf32>,
    %56 = vector.extract_strided_slice %13 {offsets = [16, 0], sizes = [8, 128], strides = [1, 1]} : vector<64x128xf32> to vector<8x128xf32>
    %cst_23 = arith.constant dense<0.000000e+00> : vector<8x128xf32>
    %57 = tpu.matmul %54, %9, %cst_23 {dimension_numbers = #tpu.dot_dimension_numbers<[1], [0], [0], [1], [0, 0, 1, 1], [], []>} : vector<8x32xf32>, vector<32x128xf32>, vector<8x128xf32> -> vector<8x128xf32>
    %58 = arith.addf %56, %57 : vector<8x128xf32>
    %59 = arith.negf %58 : vector<8x128xf32>
    %60 = math.exp %59 : vector<8x128xf32>
    %cst_24 = arith.constant 1.000000e+00 : f32
    %61 = vector.broadcast %cst_24 : f32 to vector<8x128xf32>
    %62 = arith.addf %61, %60 : vector<8x128xf32>
    %63 = arith.divf %61, %62 : vector<8x128xf32>
    %64 = math.tanh %58 : vector<8x128xf32>
    %65 = vector.extract_strided_slice %63 {offsets = [0, 0], sizes = [8, 32], strides = [1, 1]} : vector<8x128xf32> to vector<8x32xf32>
    %66 = vector.extract_strided_slice %63 {offsets = [0, 32], sizes = [8, 32], strides = [1, 1]} : vector<8x128xf32> to vector<8x32xf32>
    %67 = vector.extract_strided_slice %64 {offsets = [0, 64], sizes = [8, 32], strides = [1, 1]} : vector<8x128xf32> to vector<8x32xf32>
    %68 = vector.extract_strided_slice %63 {offsets = [0, 96], sizes = [8, 32], strides = [1, 1]} : vector<8x128xf32> to vector<8x32xf32>
    %69 = arith.mulf %66, %52 : vector<8x32xf32>
    %70 = arith.mulf %65, %67 : vector<8x32xf32>
    %71 = arith.addf %69, %70 : vector<8x32xf32>
    %72 = math.tanh %71 : vector<8x32xf32>
    %73 = arith.mulf %68, %72 : vector<8x32xf32>
    %c16 = arith.constant 16 : index
    %c0_25 = arith.constant 0 : index
    %74 = vector.load %arg15[%c16, %c0_25] : memref<64x32xf32, #tpu.memory_space<vmem>>, vector<8x32xf32>
    tpu.vector_store %arg15[%c16, %c0_25], %73 {strides = array<i32>} : memref<64x32xf32, #tpu.memory_space<vmem>>, vector<8x32xf32>,
    %75 = vector.extract_strided_slice %13 {offsets = [24, 0], sizes = [8, 128], strides = [1, 1]} : vector<64x128xf32> to vector<8x128xf32>
    %cst_26 = arith.constant dense<0.000000e+00> : vector<8x128xf32>
    %76 = tpu.matmul %73, %9, %cst_26 {dimension_numbers = #tpu.dot_dimension_numbers<[1], [0], [0], [1], [0, 0, 1, 1], [], []>} : vector<8x32xf32>, vector<32x128xf32>, vector<8x128xf32> -> vector<8x128xf32>
    %77 = arith.addf %75, %76 : vector<8x128xf32>
    %78 = arith.negf %77 : vector<8x128xf32>
    %79 = math.exp %78 : vector<8x128xf32>
    %cst_27 = arith.constant 1.000000e+00 : f32
    %80 = vector.broadcast %cst_27 : f32 to vector<8x128xf32>
    %81 = arith.addf %80, %79 : vector<8x128xf32>
    %82 = arith.divf %80, %81 : vector<8x128xf32>
    %83 = math.tanh %77 : vector<8x128xf32>
    %84 = vector.extract_strided_slice %82 {offsets = [0, 0], sizes = [8, 32], strides = [1, 1]} : vector<8x128xf32> to vector<8x32xf32>
    %85 = vector.extract_strided_slice %82 {offsets = [0, 32], sizes = [8, 32], strides = [1, 1]} : vector<8x128xf32> to vector<8x32xf32>
    %86 = vector.extract_strided_slice %83 {offsets = [0, 64], sizes = [8, 32], strides = [1, 1]} : vector<8x128xf32> to vector<8x32xf32>
    %87 = vector.extract_strided_slice %82 {offsets = [0, 96], sizes = [8, 32], strides = [1, 1]} : vector<8x128xf32> to vector<8x32xf32>
    %88 = arith.mulf %85, %71 : vector<8x32xf32>
    %89 = arith.mulf %84, %86 : vector<8x32xf32>
    %90 = arith.addf %88, %89 : vector<8x32xf32>
    %91 = math.tanh %90 : vector<8x32xf32>
    %92 = arith.mulf %87, %91 : vector<8x32xf32>
    %c24 = arith.constant 24 : index
    %c0_28 = arith.constant 0 : index
    %93 = vector.load %arg15[%c24, %c0_28] : memref<64x32xf32, #tpu.memory_space<vmem>>, vector<8x32xf32>
    tpu.vector_store %arg15[%c24, %c0_28], %92 {strides = array<i32>} : memref<64x32xf32, #tpu.memory_space<vmem>>, vector<8x32xf32>,
    %94 = vector.extract_strided_slice %13 {offsets = [32, 0], sizes = [8, 128], strides = [1, 1]} : vector<64x128xf32> to vector<8x128xf32>
    %cst_29 = arith.constant dense<0.000000e+00> : vector<8x128xf32>
    %95 = tpu.matmul %92, %9, %cst_29 {dimension_numbers = #tpu.dot_dimension_numbers<[1], [0], [0], [1], [0, 0, 1, 1], [], []>} : vector<8x32xf32>, vector<32x128xf32>, vector<8x128xf32> -> vector<8x128xf32>
    %96 = arith.addf %94, %95 : vector<8x128xf32>
    %97 = arith.negf %96 : vector<8x128xf32>
    %98 = math.exp %97 : vector<8x128xf32>
    %cst_30 = arith.constant 1.000000e+00 : f32
    %99 = vector.broadcast %cst_30 : f32 to vector<8x128xf32>
    %100 = arith.addf %99, %98 : vector<8x128xf32>
    %101 = arith.divf %99, %100 : vector<8x128xf32>
    %102 = math.tanh %96 : vector<8x128xf32>
    %103 = vector.extract_strided_slice %101 {offsets = [0, 0], sizes = [8, 32], strides = [1, 1]} : vector<8x128xf32> to vector<8x32xf32>
    %104 = vector.extract_strided_slice %101 {offsets = [0, 32], sizes = [8, 32], strides = [1, 1]} : vector<8x128xf32> to vector<8x32xf32>
    %105 = vector.extract_strided_slice %102 {offsets = [0, 64], sizes = [8, 32], strides = [1, 1]} : vector<8x128xf32> to vector<8x32xf32>
    %106 = vector.extract_strided_slice %101 {offsets = [0, 96], sizes = [8, 32], strides = [1, 1]} : vector<8x128xf32> to vector<8x32xf32>
    %107 = arith.mulf %104, %90 : vector<8x32xf32>
    %108 = arith.mulf %103, %105 : vector<8x32xf32>
    %109 = arith.addf %107, %108 : vector<8x32xf32>
    %110 = math.tanh %109 : vector<8x32xf32>
    %111 = arith.mulf %106, %110 : vector<8x32xf32>
    %c32 = arith.constant 32 : index
    %c0_31 = arith.constant 0 : index
    %112 = vector.load %arg15[%c32, %c0_31] : memref<64x32xf32, #tpu.memory_space<vmem>>, vector<8x32xf32>
    tpu.vector_store %arg15[%c32, %c0_31], %111 {strides = array<i32>} : memref<64x32xf32, #tpu.memory_space<vmem>>, vector<8x32xf32>,
    %113 = vector.extract_strided_slice %13 {offsets = [40, 0], sizes = [8, 128], strides = [1, 1]} : vector<64x128xf32> to vector<8x128xf32>
    %cst_32 = arith.constant dense<0.000000e+00> : vector<8x128xf32>
    %114 = tpu.matmul %111, %9, %cst_32 {dimension_numbers = #tpu.dot_dimension_numbers<[1], [0], [0], [1], [0, 0, 1, 1], [], []>} : vector<8x32xf32>, vector<32x128xf32>, vector<8x128xf32> -> vector<8x128xf32>
    %115 = arith.addf %113, %114 : vector<8x128xf32>
    %116 = arith.negf %115 : vector<8x128xf32>
    %117 = math.exp %116 : vector<8x128xf32>
    %cst_33 = arith.constant 1.000000e+00 : f32
    %118 = vector.broadcast %cst_33 : f32 to vector<8x128xf32>
    %119 = arith.addf %118, %117 : vector<8x128xf32>
    %120 = arith.divf %118, %119 : vector<8x128xf32>
    %121 = math.tanh %115 : vector<8x128xf32>
    %122 = vector.extract_strided_slice %120 {offsets = [0, 0], sizes = [8, 32], strides = [1, 1]} : vector<8x128xf32> to vector<8x32xf32>
    %123 = vector.extract_strided_slice %120 {offsets = [0, 32], sizes = [8, 32], strides = [1, 1]} : vector<8x128xf32> to vector<8x32xf32>
    %124 = vector.extract_strided_slice %121 {offsets = [0, 64], sizes = [8, 32], strides = [1, 1]} : vector<8x128xf32> to vector<8x32xf32>
    %125 = vector.extract_strided_slice %120 {offsets = [0, 96], sizes = [8, 32], strides = [1, 1]} : vector<8x128xf32> to vector<8x32xf32>
    %126 = arith.mulf %123, %109 : vector<8x32xf32>
    %127 = arith.mulf %122, %124 : vector<8x32xf32>
    %128 = arith.addf %126, %127 : vector<8x32xf32>
    %129 = math.tanh %128 : vector<8x32xf32>
    %130 = arith.mulf %125, %129 : vector<8x32xf32>
    %c40 = arith.constant 40 : index
    %c0_34 = arith.constant 0 : index
    %131 = vector.load %arg15[%c40, %c0_34] : memref<64x32xf32, #tpu.memory_space<vmem>>, vector<8x32xf32>
    tpu.vector_store %arg15[%c40, %c0_34], %130 {strides = array<i32>} : memref<64x32xf32, #tpu.memory_space<vmem>>, vector<8x32xf32>,
    %132 = vector.extract_strided_slice %13 {offsets = [48, 0], sizes = [8, 128], strides = [1, 1]} : vector<64x128xf32> to vector<8x128xf32>
    %cst_35 = arith.constant dense<0.000000e+00> : vector<8x128xf32>
    %133 = tpu.matmul %130, %9, %cst_35 {dimension_numbers = #tpu.dot_dimension_numbers<[1], [0], [0], [1], [0, 0, 1, 1], [], []>} : vector<8x32xf32>, vector<32x128xf32>, vector<8x128xf32> -> vector<8x128xf32>
    %134 = arith.addf %132, %133 : vector<8x128xf32>
    %135 = arith.negf %134 : vector<8x128xf32>
    %136 = math.exp %135 : vector<8x128xf32>
    %cst_36 = arith.constant 1.000000e+00 : f32
    %137 = vector.broadcast %cst_36 : f32 to vector<8x128xf32>
    %138 = arith.addf %137, %136 : vector<8x128xf32>
    %139 = arith.divf %137, %138 : vector<8x128xf32>
    %140 = math.tanh %134 : vector<8x128xf32>
    %141 = vector.extract_strided_slice %139 {offsets = [0, 0], sizes = [8, 32], strides = [1, 1]} : vector<8x128xf32> to vector<8x32xf32>
    %142 = vector.extract_strided_slice %139 {offsets = [0, 32], sizes = [8, 32], strides = [1, 1]} : vector<8x128xf32> to vector<8x32xf32>
    %143 = vector.extract_strided_slice %140 {offsets = [0, 64], sizes = [8, 32], strides = [1, 1]} : vector<8x128xf32> to vector<8x32xf32>
    %144 = vector.extract_strided_slice %139 {offsets = [0, 96], sizes = [8, 32], strides = [1, 1]} : vector<8x128xf32> to vector<8x32xf32>
    %145 = arith.mulf %142, %128 : vector<8x32xf32>
    %146 = arith.mulf %141, %143 : vector<8x32xf32>
    %147 = arith.addf %145, %146 : vector<8x32xf32>
    %148 = math.tanh %147 : vector<8x32xf32>
    %149 = arith.mulf %144, %148 : vector<8x32xf32>
    %c48 = arith.constant 48 : index
    %c0_37 = arith.constant 0 : index
    %150 = vector.load %arg15[%c48, %c0_37] : memref<64x32xf32, #tpu.memory_space<vmem>>, vector<8x32xf32>
    tpu.vector_store %arg15[%c48, %c0_37], %149 {strides = array<i32>} : memref<64x32xf32, #tpu.memory_space<vmem>>, vector<8x32xf32>,
    %151 = vector.extract_strided_slice %13 {offsets = [56, 0], sizes = [8, 128], strides = [1, 1]} : vector<64x128xf32> to vector<8x128xf32>
    %cst_38 = arith.constant dense<0.000000e+00> : vector<8x128xf32>
    %152 = tpu.matmul %149, %9, %cst_38 {dimension_numbers = #tpu.dot_dimension_numbers<[1], [0], [0], [1], [0, 0, 1, 1], [], []>} : vector<8x32xf32>, vector<32x128xf32>, vector<8x128xf32> -> vector<8x128xf32>
    %153 = arith.addf %151, %152 : vector<8x128xf32>
    %154 = arith.negf %153 : vector<8x128xf32>
    %155 = math.exp %154 : vector<8x128xf32>
    %cst_39 = arith.constant 1.000000e+00 : f32
    %156 = vector.broadcast %cst_39 : f32 to vector<8x128xf32>
    %157 = arith.addf %156, %155 : vector<8x128xf32>
    %158 = arith.divf %156, %157 : vector<8x128xf32>
    %159 = math.tanh %153 : vector<8x128xf32>
    %160 = vector.extract_strided_slice %158 {offsets = [0, 0], sizes = [8, 32], strides = [1, 1]} : vector<8x128xf32> to vector<8x32xf32>
    %161 = vector.extract_strided_slice %158 {offsets = [0, 32], sizes = [8, 32], strides = [1, 1]} : vector<8x128xf32> to vector<8x32xf32>
    %162 = vector.extract_strided_slice %159 {offsets = [0, 64], sizes = [8, 32], strides = [1, 1]} : vector<8x128xf32> to vector<8x32xf32>
    %163 = vector.extract_strided_slice %158 {offsets = [0, 96], sizes = [8, 32], strides = [1, 1]} : vector<8x128xf32> to vector<8x32xf32>
    %164 = arith.mulf %161, %147 : vector<8x32xf32>
    %165 = arith.mulf %160, %162 : vector<8x32xf32>
    %166 = arith.addf %164, %165 : vector<8x32xf32>
    %167 = math.tanh %166 : vector<8x32xf32>
    %168 = arith.mulf %163, %167 : vector<8x32xf32>
    %c56 = arith.constant 56 : index
    %c0_40 = arith.constant 0 : index
    %169 = vector.load %arg15[%c56, %c0_40] : memref<64x32xf32, #tpu.memory_space<vmem>>, vector<8x32xf32>
    tpu.vector_store %arg15[%c56, %c0_40], %168 {strides = array<i32>} : memref<64x32xf32, #tpu.memory_space<vmem>>, vector<8x32xf32>,
    %c0_41 = arith.constant 0 : index
    %c0_42 = arith.constant 0 : index
    %c0_43 = arith.constant 0 : index
    %170 = vector.load %arg13[%c0_41, %c0_42, %c0_43] : memref<2x8x32xf32, #tpu.memory_space<vmem>>, vector<1x8x32xf32>
    %171 = vector.shape_cast %170 : vector<1x8x32xf32> to vector<8x32xf32>
    %172 = vector.shape_cast %168 : vector<8x32xf32> to vector<1x8x32xf32>
    tpu.vector_store %arg13[%c0_41, %c0_42, %c0_43], %172 {strides = array<i32>} : memref<2x8x32xf32, #tpu.memory_space<vmem>>, vector<1x8x32xf32>,
    %c0_44 = arith.constant 0 : index
    %c0_45 = arith.constant 0 : index
    %c0_46 = arith.constant 0 : index
    %173 = vector.load %arg14[%c0_44, %c0_45, %c0_46] : memref<2x8x32xf32, #tpu.memory_space<vmem>>, vector<1x8x32xf32>
    %174 = vector.shape_cast %173 : vector<1x8x32xf32> to vector<8x32xf32>
    %175 = vector.shape_cast %166 : vector<8x32xf32> to vector<1x8x32xf32>
    tpu.vector_store %arg14[%c0_44, %c0_45, %c0_46], %175 {strides = array<i32>} : memref<2x8x32xf32, #tpu.memory_space<vmem>>, vector<1x8x32xf32>,
    %c0_47 = arith.constant 0 : index
    %c0_48 = arith.constant 0 : index
    %176 = vector.load %arg15[%c0_47, %c0_48] : memref<64x32xf32, #tpu.memory_space<vmem>>, vector<64x32xf32>
    %c0_49 = arith.constant 0 : index
    %c0_50 = arith.constant 0 : index
    %177 = vector.load %arg5[%c0_49, %c0_50] : memref<32x128xf32, #tpu.memory_space<vmem>>, vector<32x128xf32>
    %c0_51 = arith.constant 0 : index
    %c0_52 = arith.constant 0 : index
    %178 = vector.load %arg6[%c0_51, %c0_52] : memref<32x128xf32, #tpu.memory_space<vmem>>, vector<32x128xf32>
    %c0_53 = arith.constant 0 : index
    %c0_54 = arith.constant 0 : index
    %179 = vector.load %arg7[%c0_53, %c0_54] : memref<1x128xf32, #tpu.memory_space<vmem>>, vector<1x128xf32>
    %cst_55 = arith.constant dense<0.000000e+00> : vector<64x128xf32>
    %180 = tpu.matmul %176, %177, %cst_55 {dimension_numbers = #tpu.dot_dimension_numbers<[1], [0], [0], [1], [0, 0, 1, 1], [], []>} : vector<64x32xf32>, vector<32x128xf32>, vector<64x128xf32> -> vector<64x128xf32>
    %181 = vector.broadcast %179 : vector<1x128xf32> to vector<64x128xf32>
    %182 = arith.addf %180, %181 : vector<64x128xf32>
    %c1 = arith.constant 1 : index
    %c0_56 = arith.constant 0 : index
    %c0_57 = arith.constant 0 : index
    %183 = vector.load %arg8[%c1, %c0_56, %c0_57] : memref<2x8x32xf32, #tpu.memory_space<vmem>>, vector<1x8x32xf32>
    %184 = vector.shape_cast %183 : vector<1x8x32xf32> to vector<8x32xf32>
    %c1_58 = arith.constant 1 : index
    %c0_59 = arith.constant 0 : index
    %c0_60 = arith.constant 0 : index
    %185 = vector.load %arg9[%c1_58, %c0_59, %c0_60] : memref<2x8x32xf32, #tpu.memory_space<vmem>>, vector<1x8x32xf32>
    %186 = vector.shape_cast %185 : vector<1x8x32xf32> to vector<8x32xf32>
    %187 = vector.extract_strided_slice %182 {offsets = [0, 0], sizes = [8, 128], strides = [1, 1]} : vector<64x128xf32> to vector<8x128xf32>
    %cst_61 = arith.constant dense<0.000000e+00> : vector<8x128xf32>
    %188 = tpu.matmul %184, %178, %cst_61 {dimension_numbers = #tpu.dot_dimension_numbers<[1], [0], [0], [1], [0, 0, 1, 1], [], []>} : vector<8x32xf32>, vector<32x128xf32>, vector<8x128xf32> -> vector<8x128xf32>
    %189 = arith.addf %187, %188 : vector<8x128xf32>
    %190 = arith.negf %189 : vector<8x128xf32>
    %191 = math.exp %190 : vector<8x128xf32>
    %cst_62 = arith.constant 1.000000e+00 : f32
    %192 = vector.broadcast %cst_62 : f32 to vector<8x128xf32>
    %193 = arith.addf %192, %191 : vector<8x128xf32>
    %194 = arith.divf %192, %193 : vector<8x128xf32>
    %195 = math.tanh %189 : vector<8x128xf32>
    %196 = vector.extract_strided_slice %194 {offsets = [0, 0], sizes = [8, 32], strides = [1, 1]} : vector<8x128xf32> to vector<8x32xf32>
    %197 = vector.extract_strided_slice %194 {offsets = [0, 32], sizes = [8, 32], strides = [1, 1]} : vector<8x128xf32> to vector<8x32xf32>
    %198 = vector.extract_strided_slice %195 {offsets = [0, 64], sizes = [8, 32], strides = [1, 1]} : vector<8x128xf32> to vector<8x32xf32>
    %199 = vector.extract_strided_slice %194 {offsets = [0, 96], sizes = [8, 32], strides = [1, 1]} : vector<8x128xf32> to vector<8x32xf32>
    %200 = arith.mulf %197, %186 : vector<8x32xf32>
    %201 = arith.mulf %196, %198 : vector<8x32xf32>
    %202 = arith.addf %200, %201 : vector<8x32xf32>
    %203 = math.tanh %202 : vector<8x32xf32>
    %204 = arith.mulf %199, %203 : vector<8x32xf32>
    %c0_63 = arith.constant 0 : index
    %c0_64 = arith.constant 0 : index
    %205 = vector.load %arg15[%c0_63, %c0_64] : memref<64x32xf32, #tpu.memory_space<vmem>>, vector<8x32xf32>
    tpu.vector_store %arg15[%c0_63, %c0_64], %204 {strides = array<i32>} : memref<64x32xf32, #tpu.memory_space<vmem>>, vector<8x32xf32>,
    %206 = vector.extract_strided_slice %182 {offsets = [8, 0], sizes = [8, 128], strides = [1, 1]} : vector<64x128xf32> to vector<8x128xf32>
    %cst_65 = arith.constant dense<0.000000e+00> : vector<8x128xf32>
    %207 = tpu.matmul %204, %178, %cst_65 {dimension_numbers = #tpu.dot_dimension_numbers<[1], [0], [0], [1], [0, 0, 1, 1], [], []>} : vector<8x32xf32>, vector<32x128xf32>, vector<8x128xf32> -> vector<8x128xf32>
    %208 = arith.addf %206, %207 : vector<8x128xf32>
    %209 = arith.negf %208 : vector<8x128xf32>
    %210 = math.exp %209 : vector<8x128xf32>
    %cst_66 = arith.constant 1.000000e+00 : f32
    %211 = vector.broadcast %cst_66 : f32 to vector<8x128xf32>
    %212 = arith.addf %211, %210 : vector<8x128xf32>
    %213 = arith.divf %211, %212 : vector<8x128xf32>
    %214 = math.tanh %208 : vector<8x128xf32>
    %215 = vector.extract_strided_slice %213 {offsets = [0, 0], sizes = [8, 32], strides = [1, 1]} : vector<8x128xf32> to vector<8x32xf32>
    %216 = vector.extract_strided_slice %213 {offsets = [0, 32], sizes = [8, 32], strides = [1, 1]} : vector<8x128xf32> to vector<8x32xf32>
    %217 = vector.extract_strided_slice %214 {offsets = [0, 64], sizes = [8, 32], strides = [1, 1]} : vector<8x128xf32> to vector<8x32xf32>
    %218 = vector.extract_strided_slice %213 {offsets = [0, 96], sizes = [8, 32], strides = [1, 1]} : vector<8x128xf32> to vector<8x32xf32>
    %219 = arith.mulf %216, %202 : vector<8x32xf32>
    %220 = arith.mulf %215, %217 : vector<8x32xf32>
    %221 = arith.addf %219, %220 : vector<8x32xf32>
    %222 = math.tanh %221 : vector<8x32xf32>
    %223 = arith.mulf %218, %222 : vector<8x32xf32>
    %c8_67 = arith.constant 8 : index
    %c0_68 = arith.constant 0 : index
    %224 = vector.load %arg15[%c8_67, %c0_68] : memref<64x32xf32, #tpu.memory_space<vmem>>, vector<8x32xf32>
    tpu.vector_store %arg15[%c8_67, %c0_68], %223 {strides = array<i32>} : memref<64x32xf32, #tpu.memory_space<vmem>>, vector<8x32xf32>,
    %225 = vector.extract_strided_slice %182 {offsets = [16, 0], sizes = [8, 128], strides = [1, 1]} : vector<64x128xf32> to vector<8x128xf32>
    %cst_69 = arith.constant dense<0.000000e+00> : vector<8x128xf32>
    %226 = tpu.matmul %223, %178, %cst_69 {dimension_numbers = #tpu.dot_dimension_numbers<[1], [0], [0], [1], [0, 0, 1, 1], [], []>} : vector<8x32xf32>, vector<32x128xf32>, vector<8x128xf32> -> vector<8x128xf32>
    %227 = arith.addf %225, %226 : vector<8x128xf32>
    %228 = arith.negf %227 : vector<8x128xf32>
    %229 = math.exp %228 : vector<8x128xf32>
    %cst_70 = arith.constant 1.000000e+00 : f32
    %230 = vector.broadcast %cst_70 : f32 to vector<8x128xf32>
    %231 = arith.addf %230, %229 : vector<8x128xf32>
    %232 = arith.divf %230, %231 : vector<8x128xf32>
    %233 = math.tanh %227 : vector<8x128xf32>
    %234 = vector.extract_strided_slice %232 {offsets = [0, 0], sizes = [8, 32], strides = [1, 1]} : vector<8x128xf32> to vector<8x32xf32>
    %235 = vector.extract_strided_slice %232 {offsets = [0, 32], sizes = [8, 32], strides = [1, 1]} : vector<8x128xf32> to vector<8x32xf32>
    %236 = vector.extract_strided_slice %233 {offsets = [0, 64], sizes = [8, 32], strides = [1, 1]} : vector<8x128xf32> to vector<8x32xf32>
    %237 = vector.extract_strided_slice %232 {offsets = [0, 96], sizes = [8, 32], strides = [1, 1]} : vector<8x128xf32> to vector<8x32xf32>
    %238 = arith.mulf %235, %221 : vector<8x32xf32>
    %239 = arith.mulf %234, %236 : vector<8x32xf32>
    %240 = arith.addf %238, %239 : vector<8x32xf32>
    %241 = math.tanh %240 : vector<8x32xf32>
    %242 = arith.mulf %237, %241 : vector<8x32xf32>
    %c16_71 = arith.constant 16 : index
    %c0_72 = arith.constant 0 : index
    %243 = vector.load %arg15[%c16_71, %c0_72] : memref<64x32xf32, #tpu.memory_space<vmem>>, vector<8x32xf32>
    tpu.vector_store %arg15[%c16_71, %c0_72], %242 {strides = array<i32>} : memref<64x32xf32, #tpu.memory_space<vmem>>, vector<8x32xf32>,
    %244 = vector.extract_strided_slice %182 {offsets = [24, 0], sizes = [8, 128], strides = [1, 1]} : vector<64x128xf32> to vector<8x128xf32>
    %cst_73 = arith.constant dense<0.000000e+00> : vector<8x128xf32>
    %245 = tpu.matmul %242, %178, %cst_73 {dimension_numbers = #tpu.dot_dimension_numbers<[1], [0], [0], [1], [0, 0, 1, 1], [], []>} : vector<8x32xf32>, vector<32x128xf32>, vector<8x128xf32> -> vector<8x128xf32>
    %246 = arith.addf %244, %245 : vector<8x128xf32>
    %247 = arith.negf %246 : vector<8x128xf32>
    %248 = math.exp %247 : vector<8x128xf32>
    %cst_74 = arith.constant 1.000000e+00 : f32
    %249 = vector.broadcast %cst_74 : f32 to vector<8x128xf32>
    %250 = arith.addf %249, %248 : vector<8x128xf32>
    %251 = arith.divf %249, %250 : vector<8x128xf32>
    %252 = math.tanh %246 : vector<8x128xf32>
    %253 = vector.extract_strided_slice %251 {offsets = [0, 0], sizes = [8, 32], strides = [1, 1]} : vector<8x128xf32> to vector<8x32xf32>
    %254 = vector.extract_strided_slice %251 {offsets = [0, 32], sizes = [8, 32], strides = [1, 1]} : vector<8x128xf32> to vector<8x32xf32>
    %255 = vector.extract_strided_slice %252 {offsets = [0, 64], sizes = [8, 32], strides = [1, 1]} : vector<8x128xf32> to vector<8x32xf32>
    %256 = vector.extract_strided_slice %251 {offsets = [0, 96], sizes = [8, 32], strides = [1, 1]} : vector<8x128xf32> to vector<8x32xf32>
    %257 = arith.mulf %254, %240 : vector<8x32xf32>
    %258 = arith.mulf %253, %255 : vector<8x32xf32>
    %259 = arith.addf %257, %258 : vector<8x32xf32>
    %260 = math.tanh %259 : vector<8x32xf32>
    %261 = arith.mulf %256, %260 : vector<8x32xf32>
    %c24_75 = arith.constant 24 : index
    %c0_76 = arith.constant 0 : index
    %262 = vector.load %arg15[%c24_75, %c0_76] : memref<64x32xf32, #tpu.memory_space<vmem>>, vector<8x32xf32>
    tpu.vector_store %arg15[%c24_75, %c0_76], %261 {strides = array<i32>} : memref<64x32xf32, #tpu.memory_space<vmem>>, vector<8x32xf32>,
    %263 = vector.extract_strided_slice %182 {offsets = [32, 0], sizes = [8, 128], strides = [1, 1]} : vector<64x128xf32> to vector<8x128xf32>
    %cst_77 = arith.constant dense<0.000000e+00> : vector<8x128xf32>
    %264 = tpu.matmul %261, %178, %cst_77 {dimension_numbers = #tpu.dot_dimension_numbers<[1], [0], [0], [1], [0, 0, 1, 1], [], []>} : vector<8x32xf32>, vector<32x128xf32>, vector<8x128xf32> -> vector<8x128xf32>
    %265 = arith.addf %263, %264 : vector<8x128xf32>
    %266 = arith.negf %265 : vector<8x128xf32>
    %267 = math.exp %266 : vector<8x128xf32>
    %cst_78 = arith.constant 1.000000e+00 : f32
    %268 = vector.broadcast %cst_78 : f32 to vector<8x128xf32>
    %269 = arith.addf %268, %267 : vector<8x128xf32>
    %270 = arith.divf %268, %269 : vector<8x128xf32>
    %271 = math.tanh %265 : vector<8x128xf32>
    %272 = vector.extract_strided_slice %270 {offsets = [0, 0], sizes = [8, 32], strides = [1, 1]} : vector<8x128xf32> to vector<8x32xf32>
    %273 = vector.extract_strided_slice %270 {offsets = [0, 32], sizes = [8, 32], strides = [1, 1]} : vector<8x128xf32> to vector<8x32xf32>
    %274 = vector.extract_strided_slice %271 {offsets = [0, 64], sizes = [8, 32], strides = [1, 1]} : vector<8x128xf32> to vector<8x32xf32>
    %275 = vector.extract_strided_slice %270 {offsets = [0, 96], sizes = [8, 32], strides = [1, 1]} : vector<8x128xf32> to vector<8x32xf32>
    %276 = arith.mulf %273, %259 : vector<8x32xf32>
    %277 = arith.mulf %272, %274 : vector<8x32xf32>
    %278 = arith.addf %276, %277 : vector<8x32xf32>
    %279 = math.tanh %278 : vector<8x32xf32>
    %280 = arith.mulf %275, %279 : vector<8x32xf32>
    %c32_79 = arith.constant 32 : index
    %c0_80 = arith.constant 0 : index
    %281 = vector.load %arg15[%c32_79, %c0_80] : memref<64x32xf32, #tpu.memory_space<vmem>>, vector<8x32xf32>
    tpu.vector_store %arg15[%c32_79, %c0_80], %280 {strides = array<i32>} : memref<64x32xf32, #tpu.memory_space<vmem>>, vector<8x32xf32>,
    %282 = vector.extract_strided_slice %182 {offsets = [40, 0], sizes = [8, 128], strides = [1, 1]} : vector<64x128xf32> to vector<8x128xf32>
    %cst_81 = arith.constant dense<0.000000e+00> : vector<8x128xf32>
    %283 = tpu.matmul %280, %178, %cst_81 {dimension_numbers = #tpu.dot_dimension_numbers<[1], [0], [0], [1], [0, 0, 1, 1], [], []>} : vector<8x32xf32>, vector<32x128xf32>, vector<8x128xf32> -> vector<8x128xf32>
    %284 = arith.addf %282, %283 : vector<8x128xf32>
    %285 = arith.negf %284 : vector<8x128xf32>
    %286 = math.exp %285 : vector<8x128xf32>
    %cst_82 = arith.constant 1.000000e+00 : f32
    %287 = vector.broadcast %cst_82 : f32 to vector<8x128xf32>
    %288 = arith.addf %287, %286 : vector<8x128xf32>
    %289 = arith.divf %287, %288 : vector<8x128xf32>
    %290 = math.tanh %284 : vector<8x128xf32>
    %291 = vector.extract_strided_slice %289 {offsets = [0, 0], sizes = [8, 32], strides = [1, 1]} : vector<8x128xf32> to vector<8x32xf32>
    %292 = vector.extract_strided_slice %289 {offsets = [0, 32], sizes = [8, 32], strides = [1, 1]} : vector<8x128xf32> to vector<8x32xf32>
    %293 = vector.extract_strided_slice %290 {offsets = [0, 64], sizes = [8, 32], strides = [1, 1]} : vector<8x128xf32> to vector<8x32xf32>
    %294 = vector.extract_strided_slice %289 {offsets = [0, 96], sizes = [8, 32], strides = [1, 1]} : vector<8x128xf32> to vector<8x32xf32>
    %295 = arith.mulf %292, %278 : vector<8x32xf32>
    %296 = arith.mulf %291, %293 : vector<8x32xf32>
    %297 = arith.addf %295, %296 : vector<8x32xf32>
    %298 = math.tanh %297 : vector<8x32xf32>
    %299 = arith.mulf %294, %298 : vector<8x32xf32>
    %c40_83 = arith.constant 40 : index
    %c0_84 = arith.constant 0 : index
    %300 = vector.load %arg15[%c40_83, %c0_84] : memref<64x32xf32, #tpu.memory_space<vmem>>, vector<8x32xf32>
    tpu.vector_store %arg15[%c40_83, %c0_84], %299 {strides = array<i32>} : memref<64x32xf32, #tpu.memory_space<vmem>>, vector<8x32xf32>,
    %301 = vector.extract_strided_slice %182 {offsets = [48, 0], sizes = [8, 128], strides = [1, 1]} : vector<64x128xf32> to vector<8x128xf32>
    %cst_85 = arith.constant dense<0.000000e+00> : vector<8x128xf32>
    %302 = tpu.matmul %299, %178, %cst_85 {dimension_numbers = #tpu.dot_dimension_numbers<[1], [0], [0], [1], [0, 0, 1, 1], [], []>} : vector<8x32xf32>, vector<32x128xf32>, vector<8x128xf32> -> vector<8x128xf32>
    %303 = arith.addf %301, %302 : vector<8x128xf32>
    %304 = arith.negf %303 : vector<8x128xf32>
    %305 = math.exp %304 : vector<8x128xf32>
    %cst_86 = arith.constant 1.000000e+00 : f32
    %306 = vector.broadcast %cst_86 : f32 to vector<8x128xf32>
    %307 = arith.addf %306, %305 : vector<8x128xf32>
    %308 = arith.divf %306, %307 : vector<8x128xf32>
    %309 = math.tanh %303 : vector<8x128xf32>
    %310 = vector.extract_strided_slice %308 {offsets = [0, 0], sizes = [8, 32], strides = [1, 1]} : vector<8x128xf32> to vector<8x32xf32>
    %311 = vector.extract_strided_slice %308 {offsets = [0, 32], sizes = [8, 32], strides = [1, 1]} : vector<8x128xf32> to vector<8x32xf32>
    %312 = vector.extract_strided_slice %309 {offsets = [0, 64], sizes = [8, 32], strides = [1, 1]} : vector<8x128xf32> to vector<8x32xf32>
    %313 = vector.extract_strided_slice %308 {offsets = [0, 96], sizes = [8, 32], strides = [1, 1]} : vector<8x128xf32> to vector<8x32xf32>
    %314 = arith.mulf %311, %297 : vector<8x32xf32>
    %315 = arith.mulf %310, %312 : vector<8x32xf32>
    %316 = arith.addf %314, %315 : vector<8x32xf32>
    %317 = math.tanh %316 : vector<8x32xf32>
    %318 = arith.mulf %313, %317 : vector<8x32xf32>
    %c48_87 = arith.constant 48 : index
    %c0_88 = arith.constant 0 : index
    %319 = vector.load %arg15[%c48_87, %c0_88] : memref<64x32xf32, #tpu.memory_space<vmem>>, vector<8x32xf32>
    tpu.vector_store %arg15[%c48_87, %c0_88], %318 {strides = array<i32>} : memref<64x32xf32, #tpu.memory_space<vmem>>, vector<8x32xf32>,
    %320 = vector.extract_strided_slice %182 {offsets = [56, 0], sizes = [8, 128], strides = [1, 1]} : vector<64x128xf32> to vector<8x128xf32>
    %cst_89 = arith.constant dense<0.000000e+00> : vector<8x128xf32>
    %321 = tpu.matmul %318, %178, %cst_89 {dimension_numbers = #tpu.dot_dimension_numbers<[1], [0], [0], [1], [0, 0, 1, 1], [], []>} : vector<8x32xf32>, vector<32x128xf32>, vector<8x128xf32> -> vector<8x128xf32>
    %322 = arith.addf %320, %321 : vector<8x128xf32>
    %323 = arith.negf %322 : vector<8x128xf32>
    %324 = math.exp %323 : vector<8x128xf32>
    %cst_90 = arith.constant 1.000000e+00 : f32
    %325 = vector.broadcast %cst_90 : f32 to vector<8x128xf32>
    %326 = arith.addf %325, %324 : vector<8x128xf32>
    %327 = arith.divf %325, %326 : vector<8x128xf32>
    %328 = math.tanh %322 : vector<8x128xf32>
    %329 = vector.extract_strided_slice %327 {offsets = [0, 0], sizes = [8, 32], strides = [1, 1]} : vector<8x128xf32> to vector<8x32xf32>
    %330 = vector.extract_strided_slice %327 {offsets = [0, 32], sizes = [8, 32], strides = [1, 1]} : vector<8x128xf32> to vector<8x32xf32>
    %331 = vector.extract_strided_slice %328 {offsets = [0, 64], sizes = [8, 32], strides = [1, 1]} : vector<8x128xf32> to vector<8x32xf32>
    %332 = vector.extract_strided_slice %327 {offsets = [0, 96], sizes = [8, 32], strides = [1, 1]} : vector<8x128xf32> to vector<8x32xf32>
    %333 = arith.mulf %330, %316 : vector<8x32xf32>
    %334 = arith.mulf %329, %331 : vector<8x32xf32>
    %335 = arith.addf %333, %334 : vector<8x32xf32>
    %336 = math.tanh %335 : vector<8x32xf32>
    %337 = arith.mulf %332, %336 : vector<8x32xf32>
    %c56_91 = arith.constant 56 : index
    %c0_92 = arith.constant 0 : index
    %338 = vector.load %arg15[%c56_91, %c0_92] : memref<64x32xf32, #tpu.memory_space<vmem>>, vector<8x32xf32>
    tpu.vector_store %arg15[%c56_91, %c0_92], %337 {strides = array<i32>} : memref<64x32xf32, #tpu.memory_space<vmem>>, vector<8x32xf32>,
    %c1_93 = arith.constant 1 : index
    %c0_94 = arith.constant 0 : index
    %c0_95 = arith.constant 0 : index
    %339 = vector.load %arg13[%c1_93, %c0_94, %c0_95] : memref<2x8x32xf32, #tpu.memory_space<vmem>>, vector<1x8x32xf32>
    %340 = vector.shape_cast %339 : vector<1x8x32xf32> to vector<8x32xf32>
    %341 = vector.shape_cast %337 : vector<8x32xf32> to vector<1x8x32xf32>
    tpu.vector_store %arg13[%c1_93, %c0_94, %c0_95], %341 {strides = array<i32>} : memref<2x8x32xf32, #tpu.memory_space<vmem>>, vector<1x8x32xf32>,
    %c1_96 = arith.constant 1 : index
    %c0_97 = arith.constant 0 : index
    %c0_98 = arith.constant 0 : index
    %342 = vector.load %arg14[%c1_96, %c0_97, %c0_98] : memref<2x8x32xf32, #tpu.memory_space<vmem>>, vector<1x8x32xf32>
    %343 = vector.shape_cast %342 : vector<1x8x32xf32> to vector<8x32xf32>
    %344 = vector.shape_cast %335 : vector<8x32xf32> to vector<1x8x32xf32>
    tpu.vector_store %arg14[%c1_96, %c0_97, %c0_98], %344 {strides = array<i32>} : memref<2x8x32xf32, #tpu.memory_space<vmem>>, vector<1x8x32xf32>,
    %c0_99 = arith.constant 0 : index
    %c0_100 = arith.constant 0 : index
    %345 = vector.load %arg15[%c0_99, %c0_100] : memref<64x32xf32, #tpu.memory_space<vmem>>, vector<64x32xf32>
    %c0_101 = arith.constant 0 : index
    %c0_102 = arith.constant 0 : index
    %346 = vector.load %arg10[%c0_101, %c0_102] : memref<32x128xf32, #tpu.memory_space<vmem>>, vector<32x128xf32>
    %cst_103 = arith.constant dense<0.000000e+00> : vector<64x128xf32>
    %347 = tpu.matmul %345, %346, %cst_103 {dimension_numbers = #tpu.dot_dimension_numbers<[1], [0], [0], [1], [0, 0, 1, 1], [], []>} : vector<64x32xf32>, vector<32x128xf32>, vector<64x128xf32> -> vector<64x128xf32>
    %c0_104 = arith.constant 0 : index
    %c0_105 = arith.constant 0 : index
    %348 = vector.load %arg11[%c0_104, %c0_105] : memref<1x128xf32, #tpu.memory_space<vmem>>, vector<1x128xf32>
    %349 = vector.broadcast %348 : vector<1x128xf32> to vector<64x128xf32>
    %350 = arith.addf %347, %349 : vector<64x128xf32>
    %c0_106 = arith.constant 0 : index
    %c0_107 = arith.constant 0 : index
    %351 = vector.load %arg12[%c0_106, %c0_107] : memref<64x128xf32, #tpu.memory_space<vmem>>, vector<64x128xf32>
    tpu.vector_store %arg12[%c0_106, %c0_107], %350 {strides = array<i32>} : memref<64x128xf32, #tpu.memory_space<vmem>>, vector<64x128xf32>,
    return
  }
}

</mosaic_0001>

<llo_original>
// kernel: lstm_lm_forward.1
$region0: #{lstm_lm_forward.1}
  #allocation0 [shape = 'u32[]', space=smem, size = 0x4, offset = 0x4, fixed_abs, tag = 'smem constant byte address 0x4 - core index']
  #allocation1 [shape = 'u32[72,128]{1,0:T(1,128)}', space=vmem, size = 0x9000, scoped, tag = 'internal scratch']
  #allocation2 [shape = 'f32[64,32]{1,0:T(8,128)}', space=vmem, size = 0x8000, scoped, tag = 'scratch operand']
  %s0 = inlined_call_operand.vmem [shape: s32[64,1], index: 0, kind: input, shape index: {}]
  %s1 = inlined_call_operand.vmem [shape: f32[64,32], index: 1, kind: input, shape index: {}]
  %s2 = inlined_call_operand.vmem [shape: f32[32,128], index: 2, kind: input, shape index: {}]
  %s3 = inlined_call_operand.vmem [shape: f32[32,128], index: 3, kind: input, shape index: {}]
  %s4 = inlined_call_operand.vmem [shape: f32[1,128], index: 4, kind: input, shape index: {}]
  %s5 = inlined_call_operand.vmem [shape: f32[32,128], index: 5, kind: input, shape index: {}]
  %s6 = inlined_call_operand.vmem [shape: f32[32,128], index: 6, kind: input, shape index: {}]
  %s7 = inlined_call_operand.vmem [shape: f32[1,128], index: 7, kind: input, shape index: {}]
  %s8 = inlined_call_operand.vmem [shape: f32[2,8,32], index: 8, kind: input, shape index: {}]
  %s9 = inlined_call_operand.vmem [shape: f32[2,8,32], index: 9, kind: input, shape index: {}]
  %s10 = inlined_call_operand.vmem [shape: f32[32,128], index: 10, kind: input, shape index: {}]
  %s11 = inlined_call_operand.vmem [shape: f32[1,128], index: 11, kind: input, shape index: {}]
  %s12 = inlined_call_operand.vmem [shape: f32[64,128], index: 12, kind: output, shape index: {0}]
  %s13 = inlined_call_operand.vmem [shape: f32[2,8,32], index: 13, kind: output, shape index: {1}]
  %s14 = inlined_call_operand.vmem [shape: f32[2,8,32], index: 14, kind: output, shape index: {2}]
  %15 = xla_tuple %s12, %s13, %s14
  %s16 = sld [smem:[#allocation0]]
  $region74: #{lstm_lm_forward.1} parent=0
    _
  %s18 = ssub.s32 1, %s16
  %s19 = scalar_select 0, %s18, %s16
  // Predicated region
  $region2: #{lstm_lm_forward.1} parent=0 // pred_check
    _
  $region3: #{lstm_lm_forward.1} parent=0 // pred_check_branch
    %21 = sbr.rel (0) target = $region5
  $region4: #{lstm_lm_forward.1} parent=0 // pred_region
    _
  $region5: #{lstm_lm_forward.1} parent=0 // pred_fallthru
    _
  // Predicated region
  $region6: #{lstm_lm_forward.1} parent=0 // pred_check
    _
  $region7: #{lstm_lm_forward.1} parent=0 // pred_check_branch
    %23 = sbr.rel (0) target = $region9
  $region8: #{lstm_lm_forward.1} parent=0 // pred_region
    _
  $region9: #{lstm_lm_forward.1} parent=0 // pred_fallthru
    _
  // Predicated region
  $region10: #{lstm_lm_forward.1} parent=0 // pred_check
    _
  $region11: #{lstm_lm_forward.1} parent=0 // pred_check_branch
    %25 = sbr.rel (0) target = $region13
  $region12: #{lstm_lm_forward.1} parent=0 // pred_region
    _
  $region13: #{lstm_lm_forward.1} parent=0 // pred_fallthru
    _
  // Predicated region
  $region14: #{lstm_lm_forward.1} parent=0 // pred_check
    _
  $region15: #{lstm_lm_forward.1} parent=0 // pred_check_branch
    %27 = sbr.rel (0) target = $region17
  $region16: #{lstm_lm_forward.1} parent=0 // pred_region
    _
  $region17: #{lstm_lm_forward.1} parent=0 // pred_fallthru
    _
  // Predicated region
  $region18: #{lstm_lm_forward.1} parent=0 // pred_check
    _
  $region19: #{lstm_lm_forward.1} parent=0 // pred_check_branch
    %29 = sbr.rel (0) target = $region21
  $region20: #{lstm_lm_forward.1} parent=0 // pred_region
    _
  $region21: #{lstm_lm_forward.1} parent=0 // pred_fallthru
    _
  // Predicated region
  $region22: #{lstm_lm_forward.1} parent=0 // pred_check
    _
  $region23: #{lstm_lm_forward.1} parent=0 // pred_check_branch
    %31 = sbr.rel (0) target = $region25
  $region24: #{lstm_lm_forward.1} parent=0 // pred_region
    _
  $region25: #{lstm_lm_forward.1} parent=0 // pred_fallthru
    _
  // Predicated region
  $region26: #{lstm_lm_forward.1} parent=0 // pred_check
    _
  $region27: #{lstm_lm_forward.1} parent=0 // pred_check_branch
    %33 = sbr.rel (0) target = $region29
  $region28: #{lstm_lm_forward.1} parent=0 // pred_region
    _
  $region29: #{lstm_lm_forward.1} parent=0 // pred_fallthru
    _
  // Predicated region
  $region30: #{lstm_lm_forward.1} parent=0 // pred_check
    _
  $region31: #{lstm_lm_forward.1} parent=0 // pred_check_branch
    %35 = sbr.rel (0) target = $region33
  $region32: #{lstm_lm_forward.1} parent=0 // pred_region
    _
  $region33: #{lstm_lm_forward.1} parent=0 // pred_fallthru
    _
  // Predicated region
  $region34: #{lstm_lm_forward.1} parent=0 // pred_check
    _
  $region35: #{lstm_lm_forward.1} parent=0 // pred_check_branch
    %37 = sbr.rel (0) target = $region37
  $region36: #{lstm_lm_forward.1} parent=0 // pred_region
    _
  $region37: #{lstm_lm_forward.1} parent=0 // pred_fallthru
    _
  // Predicated region
  $region38: #{lstm_lm_forward.1} parent=0 // pred_check
    _
  $region39: #{lstm_lm_forward.1} parent=0 // pred_check_branch
    %39 = sbr.rel (0) target = $region41
  $region40: #{lstm_lm_forward.1} parent=0 // pred_region
    _
  $region41: #{lstm_lm_forward.1} parent=0 // pred_fallthru
    _
  // Predicated region
  $region42: #{lstm_lm_forward.1} parent=0 // pred_check
    _
  $region43: #{lstm_lm_forward.1} parent=0 // pred_check_branch
    %41 = sbr.rel (0) target = $region45
  $region44: #{lstm_lm_forward.1} parent=0 // pred_region
    _
  $region45: #{lstm_lm_forward.1} parent=0 // pred_fallthru
    _
  // Predicated region
  $region46: #{lstm_lm_forward.1} parent=0 // pred_check
    _
  $region47: #{lstm_lm_forward.1} parent=0 // pred_check_branch
    %43 = sbr.rel (0) target = $region49
  $region48: #{lstm_lm_forward.1} parent=0 // pred_region
    _
  $region49: #{lstm_lm_forward.1} parent=0 // pred_fallthru
    _
  %v44 = vld [vmem:[%s0] sm:$0xff]
  %v45 = vld [vmem:[%s0 + $0x8] sm:$0xff]
  %v46 = vld [vmem:[%s0 + $0x10] sm:$0xff]
  %v47 = vld [vmem:[%s0 + $0x18] sm:$0xff]
  %v48 = vld [vmem:[%s0 + $0x20] sm:$0xff]
  %v49 = vld [vmem:[%s0 + $0x28] sm:$0xff]
  %v50 = vld [vmem:[%s0 + $0x30] sm:$0xff]
  %v51 = vld [vmem:[%s0 + $0x38] sm:$0xff]
  %v52 = vlaneseq
  %v53 = vand.u32 %v52, 127
  %54 = vset.pattern.permute.xlu0 0
  %55 = vperm.xlu0 %54, %v44
  %v56 = vpop.permute.xlu0 %55
  %57 = vset.pattern.permute.xlu0 0
  %58 = vperm.xlu0 %57, %v45
  %v59 = vpop.permute.xlu0 %58
  %60 = vset.pattern.permute.xlu0 0
  %61 = vperm.xlu0 %60, %v46
  %v62 = vpop.permute.xlu0 %61
  %63 = vset.pattern.permute.xlu0 0
  %64 = vperm.xlu0 %63, %v47
  %v65 = vpop.permute.xlu0 %64
  %66 = vset.pattern.permute.xlu0 0
  %67 = vperm.xlu0 %66, %v48
  %v68 = vpop.permute.xlu0 %67
  %69 = vset.pattern.permute.xlu0 0
  %70 = vperm.xlu0 %69, %v49
  %v71 = vpop.permute.xlu0 %70
  %72 = vset.pattern.permute.xlu0 0
  %73 = vperm.xlu0 %72, %v50
  %v74 = vpop.permute.xlu0 %73
  %75 = vset.pattern.permute.xlu0 0
  %76 = vperm.xlu0 %75, %v51
  %v77 = vpop.permute.xlu0 %76
  %vm78 = vcmp.eq.s32.totalorder %v53, %v56
  %vm79 = vcmp.eq.s32.totalorder %v53, %v59
  %vm80 = vcmp.eq.s32.totalorder %v53, %v62
  %vm81 = vcmp.eq.s32.totalorder %v53, %v65
  %vm82 = vcmp.eq.s32.totalorder %v53, %v68
  %vm83 = vcmp.eq.s32.totalorder %v53, %v71
  %vm84 = vcmp.eq.s32.totalorder %v53, %v74
  %vm85 = vcmp.eq.s32.totalorder %v53, %v77
  %v86 = vsel %vm78, 1, 0
  %v87 = vsel %vm79, 1, 0
  %v88 = vsel %vm80, 1, 0
  %v89 = vsel %vm81, 1, 0
  %v90 = vsel %vm82, 1, 0
  %v91 = vsel %vm83, 1, 0
  %v92 = vsel %vm84, 1, 0
  %v93 = vsel %vm85, 1, 0
  %v94 = vcvt.s32.f32 %v86
  %v95 = vcvt.s32.f32 %v87
  %v96 = vcvt.s32.f32 %v88
  %v97 = vcvt.s32.f32 %v89
  %v98 = vcvt.s32.f32 %v90
  %v99 = vcvt.s32.f32 %v91
  %v100 = vcvt.s32.f32 %v92
  %v101 = vcvt.s32.f32 %v93
  %v102 = vld [vmem:[%s1] sm:$0xff]
  %v103 = vld [vmem:[%s1 + $0x8] sm:$0xff]
  %v104 = vld [vmem:[%s1 + $0x10] sm:$0xff]
  %v105 = vld [vmem:[%s1 + $0x18] sm:$0xff]
  %v106 = vld [vmem:[%s1 + $0x20] sm:$0xff]
  %v107 = vld [vmem:[%s1 + $0x28] sm:$0xff]
  %v108 = vld [vmem:[%s1 + $0x30] sm:$0xff]
  %v109 = vld [vmem:[%s1 + $0x38] sm:$0xff]
  %vm110 = vcmask 523264
  %v112 = vsel %vm110, %v94, 0
  %v115 = vsel %vm110, %v95, 0
  %v118 = vsel %vm110, %v96, 0
  %v121 = vsel %vm110, %v97, 0
  %v124 = vsel %vm110, %v98, 0
  %v127 = vsel %vm110, %v99, 0
  %v130 = vsel %vm110, %v100, 0
  %v133 = vsel %vm110, %v101, 0
  %135 = vmatpush.msra.mxu0 0.0
  %136 = vmatpush.msra.mxu0 0.0
  %137 = vmatpush.msra.mxu0 0.0
  %138 = vmatpush.msra.mxu0 0.0
  %139 = vmatpush.msra.mxu0 0.0
  %140 = vmatpush.msra.mxu0 0.0
  %141 = vmatpush.msra.mxu0 0.0
  %142 = vmatpush.msra.mxu0 0.0
  %143 = vmatpush.msra.mxu0 %v109
  %144 = vmatpush.msra.mxu0 %v108
  %145 = vmatpush.msra.mxu0 %v107
  %146 = vmatpush.msra.mxu0 %v106
  %147 = vmatpush.msra.mxu0 %v105
  %148 = vmatpush.msra.mxu0 %v104
  %149 = vmatpush.msra.mxu0 %v103
  %150 = vmatpush.msra.mxu0 %v102
  %151 = vmatmul.f32.gmra.mxu0 %v112
  %v152 = vpop.f32.mrf.mxu0
  %v153 = vadd.f32 0.0, %v152
  %154 = vmatmul.f32.gmra.mxu0 %v115
  %v155 = vpop.f32.mrf.mxu0
  %v156 = vadd.f32 0.0, %v155
  %157 = vmatmul.f32.gmra.mxu0 %v118
  %v158 = vpop.f32.mrf.mxu0
  %v159 = vadd.f32 0.0, %v158
  %160 = vmatmul.f32.gmra.mxu0 %v121
  %v161 = vpop.f32.mrf.mxu0
  %v162 = vadd.f32 0.0, %v161
  %163 = vmatmul.f32.gmra.mxu0 %v124
  %v164 = vpop.f32.mrf.mxu0
  %v165 = vadd.f32 0.0, %v164
  %166 = vmatmul.f32.gmra.mxu0 %v127
  %v167 = vpop.f32.mrf.mxu0
  %v168 = vadd.f32 0.0, %v167
  %169 = vmatmul.f32.gmra.mxu0 %v130
  %v170 = vpop.f32.mrf.mxu0
  %v171 = vadd.f32 0.0, %v170
  %172 = vmatmul.f32.gmra.mxu0 %v133
  %v173 = vpop.f32.mrf.mxu0
  %v174 = vadd.f32 0.0, %v173
  %175 = vdwg.mxu0
  %v176 = vld [vmem:[%s2] sm:$0xff]
  %v177 = vld [vmem:[%s2 + $0x8] sm:$0xff]
  %v178 = vld [vmem:[%s2 + $0x10] sm:$0xff]
  %v179 = vld [vmem:[%s2 + $0x18] sm:$0xff]
  %v180 = vld [vmem:[%s3] sm:$0xff]
  %v181 = vld [vmem:[%s3 + $0x8] sm:$0xff]
  %v182 = vld [vmem:[%s3 + $0x10] sm:$0xff]
  %v183 = vld [vmem:[%s3 + $0x18] sm:$0xff]
  %v184 = vld [vmem:[%s4] sm:$0x1]
  %v186 = vperm.slane %v184, 0
  %vm188 = vcmask 261120
  %v190 = vsel %vm188, %v153, 0
  %v193 = vsel %vm188, %v156, 0
  %v196 = vsel %vm188, %v159, 0
  %v199 = vsel %vm188, %v162, 0
  %v202 = vsel %vm188, %v165, 0
  %v205 = vsel %vm188, %v168, 0
  %v208 = vsel %vm188, %v171, 0
  %v211 = vsel %vm188, %v174, 0
  %213 = vmatpush.msra.mxu0 0.0
  %214 = vmatpush.msra.mxu0 0.0
  %215 = vmatpush.msra.mxu0 0.0
  %216 = vmatpush.msra.mxu0 0.0
  %217 = vmatpush.msra.mxu0 0.0
  %218 = vmatpush.msra.mxu0 0.0
  %219 = vmatpush.msra.mxu0 0.0
  %220 = vmatpush.msra.mxu0 0.0
  %221 = vmatpush.msra.mxu0 0.0
  %222 = vmatpush.msra.mxu0 0.0
  %223 = vmatpush.msra.mxu0 0.0
  %224 = vmatpush.msra.mxu0 0.0
  %225 = vmatpush.msra.mxu0 %v179
  %226 = vmatpush.msra.mxu0 %v178
  %227 = vmatpush.msra.mxu0 %v177
  %228 = vmatpush.msra.mxu0 %v176
  %229 = vmatmul.f32.gmra.mxu0 %v190
  %v230 = vpop.f32.mrf.mxu0
  %v231 = vadd.f32 %v186, %v230
  %232 = vmatmul.f32.gmra.mxu0 %v193
  %v233 = vpop.f32.mrf.mxu0
  %v234 = vadd.f32 %v186, %v233
  %235 = vmatmul.f32.gmra.mxu0 %v196
  %v236 = vpop.f32.mrf.mxu0
  %v237 = vadd.f32 %v186, %v236
  %238 = vmatmul.f32.gmra.mxu0 %v199
  %v239 = vpop.f32.mrf.mxu0
  %v240 = vadd.f32 %v186, %v239
  %241 = vmatmul.f32.gmra.mxu0 %v202
  %v242 = vpop.f32.mrf.mxu0
  %v243 = vadd.f32 %v186, %v242
  %244 = vmatmul.f32.gmra.mxu0 %v205
  %v245 = vpop.f32.mrf.mxu0
  %v246 = vadd.f32 %v186, %v245
  %247 = vmatmul.f32.gmra.mxu0 %v208
  %v248 = vpop.f32.mrf.mxu0
  %v249 = vadd.f32 %v186, %v248
  %250 = vmatmul.f32.gmra.mxu0 %v211
  %v251 = vpop.f32.mrf.mxu0
  %v252 = vadd.f32 %v186, %v251
  %253 = vdwg.mxu0
  %v254 = vld [vmem:[%s8] sm:$0xff]
  %v255 = vld [vmem:[%s9] sm:$0xff]
  %v257 = vsel %vm188, %v254, 0
  %259 = vmatpush.msra.mxu0 0.0
  %260 = vmatpush.msra.mxu0 0.0
  %261 = vmatpush.msra.mxu0 0.0
  %262 = vmatpush.msra.mxu0 0.0
  %263 = vmatpush.msra.mxu0 0.0
  %264 = vmatpush.msra.mxu0 0.0
  %265 = vmatpush.msra.mxu0 0.0
  %266 = vmatpush.msra.mxu0 0.0
  %267 = vmatpush.msra.mxu0 0.0
  %268 = vmatpush.msra.mxu0 0.0
  %269 = vmatpush.msra.mxu0 0.0
  %270 = vmatpush.msra.mxu0 0.0
  %271 = vmatpush.msra.mxu0 %v183
  %272 = vmatpush.msra.mxu0 %v182
  %273 = vmatpush.msra.mxu0 %v181
  %274 = vmatpush.msra.mxu0 %v180
  %275 = vmatmul.f32.gmra.mxu0 %v257
  %v276 = vpop.f32.mrf.mxu0
  %v277 = vadd.f32 0.0, %v276
  %278 = vdwg.mxu0
  %v279 = vadd.f32 %v231, %v277
  %v280 = vxor.u32 %v279, 2147483648
  %v281 = vmul.f32 %v280, 1.442695
  %v282 = vpow.pop %v281
  %v283 = vadd.f32 %v282, 1.0
  %v284 = vrcp.pop %v283
  %v285 = vmul.f32 %v283, %v284
  %v286 = vsub.f32 1.0, %v285
  %v287 = vmul.f32 %v284, %v286
  %v288 = vadd.f32 %v284, %v287
  %vm289 = vweird.f32 %v283
  %vm290 = vweird.f32 %v284
  %vm291 = vmor %vm289, %vm290
  %v292 = vsel %vm291, %v284, %v288
  %v293 = vand.u32 2147483647, %v283
  %vm294 = vcmp.eq.f32.partialorder %v293, 8.507059e+37
  %v295 = vand.u32 %v283, 2147483648
  %v296 = vor.u32 1.1754944e-38, %v295
  %v297 = vsel %vm294, %v296, %v292
  %v298 = vmul.f32 1.0, %v297
  %v299 = vtanh.pop %v279
  %301 = vrot.lane.b32.xlu0 %v255, 32
  %v302 = vpop.permute.xlu0 %301
  %v304 = vmul.f32 %v298, %v302
  %306 = vrot.lane.b32.xlu0 %v299, 64
  %v307 = vpop.permute.xlu0 %306
  %v309 = vmul.f32 %v298, %v307
  %311 = vrot.lane.b32.xlu0 %v309, 32
  %v312 = vpop.permute.xlu0 %311
  %v314 = vadd.f32 %v304, %v312
  %v315 = vtanh.pop %v314
  %317 = vrot.lane.b32.xlu0 %v315, 64
  %v318 = vpop.permute.xlu0 %317
  %v320 = vmul.f32 %v298, %v318
  %322 = vrot.lane.b32.xlu0 %v320, 32
  %v323 = vpop.permute.xlu0 %322
  %325 = vst.msk [vmem:[#allocation2] sm:$0xff] %vm188, %v323
  %v326 = vsel %vm188, %v323, 0
  %328 = vmatpush.msra.mxu0 0.0
  %329 = vmatpush.msra.mxu0 0.0
  %330 = vmatpush.msra.mxu0 0.0
  %331 = vmatpush.msra.mxu0 0.0
  %332 = vmatpush.msra.mxu0 0.0
  %333 = vmatpush.msra.mxu0 0.0
  %334 = vmatpush.msra.mxu0 0.0
  %335 = vmatpush.msra.mxu0 0.0
  %336 = vmatpush.msra.mxu0 0.0
  %337 = vmatpush.msra.mxu0 0.0
  %338 = vmatpush.msra.mxu0 0.0
  %339 = vmatpush.msra.mxu0 0.0
  %340 = vmatpush.msra.mxu0 %v183
  %341 = vmatpush.msra.mxu0 %v182
  %342 = vmatpush.msra.mxu0 %v181
  %343 = vmatpush.msra.mxu0 %v180
  %344 = vmatmul.f32.gmra.mxu0 %v326
  %v345 = vpop.f32.mrf.mxu0
  %v346 = vadd.f32 0.0, %v345
  %347 = vdwg.mxu0
  %v348 = vadd.f32 %v234, %v346
  %v349 = vxor.u32 %v348, 2147483648
  %v350 = vmul.f32 %v349, 1.442695
  %v351 = vpow.pop %v350
  %v352 = vadd.f32 %v351, 1.0
  %v353 = vrcp.pop %v352
  %v354 = vmul.f32 %v352, %v353
  %v355 = vsub.f32 1.0, %v354
  %v356 = vmul.f32 %v353, %v355
  %v357 = vadd.f32 %v353, %v356
  %vm358 = vweird.f32 %v352
  %vm359 = vweird.f32 %v353
  %vm360 = vmor %vm358, %vm359
  %v361 = vsel %vm360, %v353, %v357
  %v362 = vand.u32 2147483647, %v352
  %vm363 = vcmp.eq.f32.partialorder %v362, 8.507059e+37
  %v364 = vand.u32 %v352, 2147483648
  %v365 = vor.u32 1.1754944e-38, %v364
  %v366 = vsel %vm363, %v365, %v361
  %v367 = vmul.f32 1.0, %v366
  %v368 = vtanh.pop %v348
  %v369 = vmul.f32 %v367, %v314
  %371 = vrot.lane.b32.xlu0 %v368, 64
  %v372 = vpop.permute.xlu0 %371
  %v374 = vmul.f32 %v367, %v372
  %376 = vrot.lane.b32.xlu0 %v374, 32
  %v377 = vpop.permute.xlu0 %376
  %v379 = vadd.f32 %v369, %v377
  %v380 = vtanh.pop %v379
  %382 = vrot.lane.b32.xlu0 %v380, 64
  %v383 = vpop.permute.xlu0 %382
  %v385 = vmul.f32 %v367, %v383
  %387 = vrot.lane.b32.xlu0 %v385, 32
  %v388 = vpop.permute.xlu0 %387
  %390 = vst.msk [vmem:[#allocation2 + $0x8] sm:$0xff] %vm188, %v388
  %v391 = vsel %vm188, %v388, 0
  %393 = vmatpush.msra.mxu0 0.0
  %394 = vmatpush.msra.mxu0 0.0
  %395 = vmatpush.msra.mxu0 0.0
  %396 = vmatpush.msra.mxu0 0.0
  %397 = vmatpush.msra.mxu0 0.0
  %398 = vmatpush.msra.mxu0 0.0
  %399 = vmatpush.msra.mxu0 0.0
  %400 = vmatpush.msra.mxu0 0.0
  %401 = vmatpush.msra.mxu0 0.0
  %402 = vmatpush.msra.mxu0 0.0
  %403 = vmatpush.msra.mxu0 0.0
  %404 = vmatpush.msra.mxu0 0.0
  %405 = vmatpush.msra.mxu0 %v183
  %406 = vmatpush.msra.mxu0 %v182
  %407 = vmatpush.msra.mxu0 %v181
  %408 = vmatpush.msra.mxu0 %v180
  %409 = vmatmul.f32.gmra.mxu0 %v391
  %v410 = vpop.f32.mrf.mxu0
  %v411 = vadd.f32 0.0, %v410
  %412 = vdwg.mxu0
  %v413 = vadd.f32 %v237, %v411
  %v414 = vxor.u32 %v413, 2147483648
  %v415 = vmul.f32 %v414, 1.442695
  %v416 = vpow.pop %v415
  %v417 = vadd.f32 %v416, 1.0
  %v418 = vrcp.pop %v417
  %v419 = vmul.f32 %v417, %v418
  %v420 = vsub.f32 1.0, %v419
  %v421 = vmul.f32 %v418, %v420
  %v422 = vadd.f32 %v418, %v421
  %vm423 = vweird.f32 %v417
  %vm424 = vweird.f32 %v418
  %vm425 = vmor %vm423, %vm424
  %v426 = vsel %vm425, %v418, %v422
  %v427 = vand.u32 2147483647, %v417
  %vm428 = vcmp.eq.f32.partialorder %v427, 8.507059e+37
  %v429 = vand.u32 %v417, 2147483648
  %v430 = vor.u32 1.1754944e-38, %v429
  %v431 = vsel %vm428, %v430, %v426
  %v432 = vmul.f32 1.0, %v431
  %v433 = vtanh.pop %v413
  %v434 = vmul.f32 %v432, %v379
  %436 = vrot.lane.b32.xlu0 %v433, 64
  %v437 = vpop.permute.xlu0 %436
  %v439 = vmul.f32 %v432, %v437
  %441 = vrot.lane.b32.xlu0 %v439, 32
  %v442 = vpop.permute.xlu0 %441
  %v444 = vadd.f32 %v434, %v442
  %v445 = vtanh.pop %v444
  %447 = vrot.lane.b32.xlu0 %v445, 64
  %v448 = vpop.permute.xlu0 %447
  %v450 = vmul.f32 %v432, %v448
  %452 = vrot.lane.b32.xlu0 %v450, 32
  %v453 = vpop.permute.xlu0 %452
  %455 = vst.msk [vmem:[#allocation2 + $0x10] sm:$0xff] %vm188, %v453
  %v456 = vsel %vm188, %v453, 0
  %458 = vmatpush.msra.mxu0 0.0
  %459 = vmatpush.msra.mxu0 0.0
  %460 = vmatpush.msra.mxu0 0.0
  %461 = vmatpush.msra.mxu0 0.0
  %462 = vmatpush.msra.mxu0 0.0
  %463 = vmatpush.msra.mxu0 0.0
  %464 = vmatpush.msra.mxu0 0.0
  %465 = vmatpush.msra.mxu0 0.0
  %466 = vmatpush.msra.mxu0 0.0
  %467 = vmatpush.msra.mxu0 0.0
  %468 = vmatpush.msra.mxu0 0.0
  %469 = vmatpush.msra.mxu0 0.0
  %470 = vmatpush.msra.mxu0 %v183
  %471 = vmatpush.msra.mxu0 %v182
  %472 = vmatpush.msra.mxu0 %v181
  %473 = vmatpush.msra.mxu0 %v180
  %474 = vmatmul.f32.gmra.mxu0 %v456
  %v475 = vpop.f32.mrf.mxu0
  %v476 = vadd.f32 0.0, %v475
  %477 = vdwg.mxu0
  %v478 = vadd.f32 %v240, %v476
  %v479 = vxor.u32 %v478, 2147483648
  %v480 = vmul.f32 %v479, 1.442695
  %v481 = vpow.pop %v480
  %v482 = vadd.f32 %v481, 1.0
  %v483 = vrcp.pop %v482
  %v484 = vmul.f32 %v482, %v483
  %v485 = vsub.f32 1.0, %v484
  %v486 = vmul.f32 %v483, %v485
  %v487 = vadd.f32 %v483, %v486
  %vm488 = vweird.f32 %v482
  %vm489 = vweird.f32 %v483
  %vm490 = vmor %vm488, %vm489
  %v491 = vsel %vm490, %v483, %v487
  %v492 = vand.u32 2147483647, %v482
  %vm493 = vcmp.eq.f32.partialorder %v492, 8.507059e+37
  %v494 = vand.u32 %v482, 2147483648
  %v495 = vor.u32 1.1754944e-38, %v494
  %v496 = vsel %vm493, %v495, %v491
  %v497 = vmul.f32 1.0, %v496
  %v498 = vtanh.pop %v478
  %v499 = vmul.f32 %v497, %v444
  %501 = vrot.lane.b32.xlu0 %v498, 64
  %v502 = vpop.permute.xlu0 %501
  %v504 = vmul.f32 %v497, %v502
  %506 = vrot.lane.b32.xlu0 %v504, 32
  %v507 = vpop.permute.xlu0 %506
  %v509 = vadd.f32 %v499, %v507
  %v510 = vtanh.pop %v509
  %512 = vrot.lane.b32.xlu0 %v510, 64
  %v513 = vpop.permute.xlu0 %512
  %v515 = vmul.f32 %v497, %v513
  %517 = vrot.lane.b32.xlu0 %v515, 32
  %v518 = vpop.permute.xlu0 %517
  %520 = vst.msk [vmem:[#allocation2 + $0x18] sm:$0xff] %vm188, %v518
  %v521 = vsel %vm188, %v518, 0
  %523 = vmatpush.msra.mxu0 0.0
  %524 = vmatpush.msra.mxu0 0.0
  %525 = vmatpush.msra.mxu0 0.0
  %526 = vmatpush.msra.mxu0 0.0
  %527 = vmatpush.msra.mxu0 0.0
  %528 = vmatpush.msra.mxu0 0.0
  %529 = vmatpush.msra.mxu0 0.0
  %530 = vmatpush.msra.mxu0 0.0
  %531 = vmatpush.msra.mxu0 0.0
  %532 = vmatpush.msra.mxu0 0.0
  %533 = vmatpush.msra.mxu0 0.0
  %534 = vmatpush.msra.mxu0 0.0
  %535 = vmatpush.msra.mxu0 %v183
  %536 = vmatpush.msra.mxu0 %v182
  %537 = vmatpush.msra.mxu0 %v181
  %538 = vmatpush.msra.mxu0 %v180
  %539 = vmatmul.f32.gmra.mxu0 %v521
  %v540 = vpop.f32.mrf.mxu0
  %v541 = vadd.f32 0.0, %v540
  %542 = vdwg.mxu0
  %v543 = vadd.f32 %v243, %v541
  %v544 = vxor.u32 %v543, 2147483648
  %v545 = vmul.f32 %v544, 1.442695
  %v546 = vpow.pop %v545
  %v547 = vadd.f32 %v546, 1.0
  %v548 = vrcp.pop %v547
  %v549 = vmul.f32 %v547, %v548
  %v550 = vsub.f32 1.0, %v549
  %v551 = vmul.f32 %v548, %v550
  %v552 = vadd.f32 %v548, %v551
  %vm553 = vweird.f32 %v547
  %vm554 = vweird.f32 %v548
  %vm555 = vmor %vm553, %vm554
  %v556 = vsel %vm555, %v548, %v552
  %v557 = vand.u32 2147483647, %v547
  %vm558 = vcmp.eq.f32.partialorder %v557, 8.507059e+37
  %v559 = vand.u32 %v547, 2147483648
  %v560 = vor.u32 1.1754944e-38, %v559
  %v561 = vsel %vm558, %v560, %v556
  %v562 = vmul.f32 1.0, %v561
  %v563 = vtanh.pop %v543
  %v564 = vmul.f32 %v562, %v509
  %566 = vrot.lane.b32.xlu0 %v563, 64
  %v567 = vpop.permute.xlu0 %566
  %v569 = vmul.f32 %v562, %v567
  %571 = vrot.lane.b32.xlu0 %v569, 32
  %v572 = vpop.permute.xlu0 %571
  %v574 = vadd.f32 %v564, %v572
  %v575 = vtanh.pop %v574
  %577 = vrot.lane.b32.xlu0 %v575, 64
  %v578 = vpop.permute.xlu0 %577
  %v580 = vmul.f32 %v562, %v578
  %582 = vrot.lane.b32.xlu0 %v580, 32
  %v583 = vpop.permute.xlu0 %582
  %585 = vst.msk [vmem:[#allocation2 + $0x20] sm:$0xff] %vm188, %v583
  %v586 = vsel %vm188, %v583, 0
  %588 = vmatpush.msra.mxu0 0.0
  %589 = vmatpush.msra.mxu0 0.0
  %590 = vmatpush.msra.mxu0 0.0
  %591 = vmatpush.msra.mxu0 0.0
  %592 = vmatpush.msra.mxu0 0.0
  %593 = vmatpush.msra.mxu0 0.0
  %594 = vmatpush.msra.mxu0 0.0
  %595 = vmatpush.msra.mxu0 0.0
  %596 = vmatpush.msra.mxu0 0.0
  %597 = vmatpush.msra.mxu0 0.0
  %598 = vmatpush.msra.mxu0 0.0
  %599 = vmatpush.msra.mxu0 0.0
  %600 = vmatpush.msra.mxu0 %v183
  %601 = vmatpush.msra.mxu0 %v182
  %602 = vmatpush.msra.mxu0 %v181
  %603 = vmatpush.msra.mxu0 %v180
  %604 = vmatmul.f32.gmra.mxu0 %v586
  %v605 = vpop.f32.mrf.mxu0
  %v606 = vadd.f32 0.0, %v605
  %607 = vdwg.mxu0
  %v608 = vadd.f32 %v246, %v606
  %v609 = vxor.u32 %v608, 2147483648
  %v610 = vmul.f32 %v609, 1.442695
  %v611 = vpow.pop %v610
  %v612 = vadd.f32 %v611, 1.0
  %v613 = vrcp.pop %v612
  %v614 = vmul.f32 %v612, %v613
  %v615 = vsub.f32 1.0, %v614
  %v616 = vmul.f32 %v613, %v615
  %v617 = vadd.f32 %v613, %v616
  %vm618 = vweird.f32 %v612
  %vm619 = vweird.f32 %v613
  %vm620 = vmor %vm618, %vm619
  %v621 = vsel %vm620, %v613, %v617
  %v622 = vand.u32 2147483647, %v612
  %vm623 = vcmp.eq.f32.partialorder %v622, 8.507059e+37
  %v624 = vand.u32 %v612, 2147483648
  %v625 = vor.u32 1.1754944e-38, %v624
  %v626 = vsel %vm623, %v625, %v621
  %v627 = vmul.f32 1.0, %v626
  %v628 = vtanh.pop %v608
  %v629 = vmul.f32 %v627, %v574
  %631 = vrot.lane.b32.xlu0 %v628, 64
  %v632 = vpop.permute.xlu0 %631
  %v634 = vmul.f32 %v627, %v632
  %636 = vrot.lane.b32.xlu0 %v634, 32
  %v637 = vpop.permute.xlu0 %636
  %v639 = vadd.f32 %v629, %v637
  %v640 = vtanh.pop %v639
  %642 = vrot.lane.b32.xlu0 %v640, 64
  %v643 = vpop.permute.xlu0 %642
  %v645 = vmul.f32 %v627, %v643
  %647 = vrot.lane.b32.xlu0 %v645, 32
  %v648 = vpop.permute.xlu0 %647
  %650 = vst.msk [vmem:[#allocation2 + $0x28] sm:$0xff] %vm188, %v648
  %v651 = vsel %vm188, %v648, 0
  %653 = vmatpush.msra.mxu0 0.0
  %654 = vmatpush.msra.mxu0 0.0
  %655 = vmatpush.msra.mxu0 0.0
  %656 = vmatpush.msra.mxu0 0.0
  %657 = vmatpush.msra.mxu0 0.0
  %658 = vmatpush.msra.mxu0 0.0
  %659 = vmatpush.msra.mxu0 0.0
  %660 = vmatpush.msra.mxu0 0.0
  %661 = vmatpush.msra.mxu0 0.0
  %662 = vmatpush.msra.mxu0 0.0
  %663 = vmatpush.msra.mxu0 0.0
  %664 = vmatpush.msra.mxu0 0.0
  %665 = vmatpush.msra.mxu0 %v183
  %666 = vmatpush.msra.mxu0 %v182
  %667 = vmatpush.msra.mxu0 %v181
  %668 = vmatpush.msra.mxu0 %v180
  %669 = vmatmul.f32.gmra.mxu0 %v651
  %v670 = vpop.f32.mrf.mxu0
  %v671 = vadd.f32 0.0, %v670
  %672 = vdwg.mxu0
  %v673 = vadd.f32 %v249, %v671
  %v674 = vxor.u32 %v673, 2147483648
  %v675 = vmul.f32 %v674, 1.442695
  %v676 = vpow.pop %v675
  %v677 = vadd.f32 %v676, 1.0
  %v678 = vrcp.pop %v677
  %v679 = vmul.f32 %v677, %v678
  %v680 = vsub.f32 1.0, %v679
  %v681 = vmul.f32 %v678, %v680
  %v682 = vadd.f32 %v678, %v681
  %vm683 = vweird.f32 %v677
  %vm684 = vweird.f32 %v678
  %vm685 = vmor %vm683, %vm684
  %v686 = vsel %vm685, %v678, %v682
  %v687 = vand.u32 2147483647, %v677
  %vm688 = vcmp.eq.f32.partialorder %v687, 8.507059e+37
  %v689 = vand.u32 %v677, 2147483648
  %v690 = vor.u32 1.1754944e-38, %v689
  %v691 = vsel %vm688, %v690, %v686
  %v692 = vmul.f32 1.0, %v691
  %v693 = vtanh.pop %v673
  %v694 = vmul.f32 %v692, %v639
  %696 = vrot.lane.b32.xlu0 %v693, 64
  %v697 = vpop.permute.xlu0 %696
  %v699 = vmul.f32 %v692, %v697
  %701 = vrot.lane.b32.xlu0 %v699, 32
  %v702 = vpop.permute.xlu0 %701
  %v704 = vadd.f32 %v694, %v702
  %v705 = vtanh.pop %v704
  %707 = vrot.lane.b32.xlu0 %v705, 64
  %v708 = vpop.permute.xlu0 %707
  %v710 = vmul.f32 %v692, %v708
  %712 = vrot.lane.b32.xlu0 %v710, 32
  %v713 = vpop.permute.xlu0 %712
  %715 = vst.msk [vmem:[#allocation2 + $0x30] sm:$0xff] %vm188, %v713
  %v716 = vsel %vm188, %v713, 0
  %718 = vmatpush.msra.mxu0 0.0
  %719 = vmatpush.msra.mxu0 0.0
  %720 = vmatpush.msra.mxu0 0.0
  %721 = vmatpush.msra.mxu0 0.0
  %722 = vmatpush.msra.mxu0 0.0
  %723 = vmatpush.msra.mxu0 0.0
  %724 = vmatpush.msra.mxu0 0.0
  %725 = vmatpush.msra.mxu0 0.0
  %726 = vmatpush.msra.mxu0 0.0
  %727 = vmatpush.msra.mxu0 0.0
  %728 = vmatpush.msra.mxu0 0.0
  %729 = vmatpush.msra.mxu0 0.0
  %730 = vmatpush.msra.mxu0 %v183
  %731 = vmatpush.msra.mxu0 %v182
  %732 = vmatpush.msra.mxu0 %v181
  %733 = vmatpush.msra.mxu0 %v180
  %734 = vmatmul.f32.gmra.mxu0 %v716
  %v735 = vpop.f32.mrf.mxu0
  %v736 = vadd.f32 0.0, %v735
  %737 = vdwg.mxu0
  %v738 = vadd.f32 %v252, %v736
  %v739 = vxor.u32 %v738, 2147483648
  %v740 = vmul.f32 %v739, 1.442695
  %v741 = vpow.pop %v740
  %v742 = vadd.f32 %v741, 1.0
  %v743 = vrcp.pop %v742
  %v744 = vmul.f32 %v742, %v743
  %v745 = vsub.f32 1.0, %v744
  %v746 = vmul.f32 %v743, %v745
  %v747 = vadd.f32 %v743, %v746
  %vm748 = vweird.f32 %v742
  %vm749 = vweird.f32 %v743
  %vm750 = vmor %vm748, %vm749
  %v751 = vsel %vm750, %v743, %v747
  %v752 = vand.u32 2147483647, %v742
  %vm753 = vcmp.eq.f32.partialorder %v752, 8.507059e+37
  %v754 = vand.u32 %v742, 2147483648
  %v755 = vor.u32 1.1754944e-38, %v754
  %v756 = vsel %vm753, %v755, %v751
  %v757 = vmul.f32 1.0, %v756
  %v758 = vtanh.pop %v738
  %v759 = vmul.f32 %v757, %v704
  %761 = vrot.lane.b32.xlu0 %v758, 64
  %v762 = vpop.permute.xlu0 %761
  %v764 = vmul.f32 %v757, %v762
  %766 = vrot.lane.b32.xlu0 %v764, 32
  %v767 = vpop.permute.xlu0 %766
  %v769 = vadd.f32 %v759, %v767
  %v770 = vtanh.pop %v769
  %772 = vrot.lane.b32.xlu0 %v770, 64
  %v773 = vpop.permute.xlu0 %772
  %v775 = vmul.f32 %v757, %v773
  %777 = vrot.lane.b32.xlu0 %v775, 32
  %v778 = vpop.permute.xlu0 %777
  %780 = vst.msk [vmem:[#allocation2 + $0x38] sm:$0xff] %vm188, %v778
  %781 = vst.msk [vmem:[%s13] sm:$0xff] %vm188, %v778
  %783 = vrot.lane.b32.xlu0 %v769, 96
  %v784 = vpop.permute.xlu0 %783
  %786 = vst.msk [vmem:[%s14] sm:$0xff] %vm188, %v784
  %v787 = vld [vmem:[#allocation2] sm:$0xff]
  %v788 = vld [vmem:[#allocation2 + $0x8] sm:$0xff]
  %v789 = vld [vmem:[#allocation2 + $0x10] sm:$0xff]
  %v790 = vld [vmem:[#allocation2 + $0x18] sm:$0xff]
  %v791 = vld [vmem:[#allocation2 + $0x20] sm:$0xff]
  %v792 = vld [vmem:[#allocation2 + $0x28] sm:$0xff]
  %v793 = vld [vmem:[#allocation2 + $0x30] sm:$0xff]
  %v794 = vld [vmem:[#allocation2 + $0x38] sm:$0xff]
  %v795 = vld [vmem:[%s5] sm:$0xff]
  %v796 = vld [vmem:[%s5 + $0x8] sm:$0xff]
  %v797 = vld [vmem:[%s5 + $0x10] sm:$0xff]
  %v798 = vld [vmem:[%s5 + $0x18] sm:$0xff]
  %v799 = vld [vmem:[%s6] sm:$0xff]
  %v800 = vld [vmem:[%s6 + $0x8] sm:$0xff]
  %v801 = vld [vmem:[%s6 + $0x10] sm:$0xff]
  %v802 = vld [vmem:[%s6 + $0x18] sm:$0xff]
  %v803 = vld [vmem:[%s7] sm:$0x1]
  %v805 = vperm.slane %v803, 0
  %v808 = vsel %vm188, %v787, 0
  %v811 = vsel %vm188, %v788, 0
  %v814 = vsel %vm188, %v789, 0
  %v817 = vsel %vm188, %v790, 0
  %v820 = vsel %vm188, %v791, 0
  %v823 = vsel %vm188, %v792, 0
  %v826 = vsel %vm188, %v793, 0
  %v829 = vsel %vm188, %v794, 0
  %831 = vmatpush.msra.mxu0 0.0
  %832 = vmatpush.msra.mxu0 0.0
  %833 = vmatpush.msra.mxu0 0.0
  %834 = vmatpush.msra.mxu0 0.0
  %835 = vmatpush.msra.mxu0 0.0
  %836 = vmatpush.msra.mxu0 0.0
  %837 = vmatpush.msra.mxu0 0.0
  %838 = vmatpush.msra.mxu0 0.0
  %839 = vmatpush.msra.mxu0 0.0
  %840 = vmatpush.msra.mxu0 0.0
  %841 = vmatpush.msra.mxu0 0.0
  %842 = vmatpush.msra.mxu0 0.0
  %843 = vmatpush.msra.mxu0 %v798
  %844 = vmatpush.msra.mxu0 %v797
  %845 = vmatpush.msra.mxu0 %v796
  %846 = vmatpush.msra.mxu0 %v795
  %847 = vmatmul.f32.gmra.mxu0 %v808
  %v848 = vpop.f32.mrf.mxu0
  %v849 = vadd.f32 %v805, %v848
  %850 = vmatmul.f32.gmra.mxu0 %v811
  %v851 = vpop.f32.mrf.mxu0
  %v852 = vadd.f32 %v805, %v851
  %853 = vmatmul.f32.gmra.mxu0 %v814
  %v854 = vpop.f32.mrf.mxu0
  %v855 = vadd.f32 %v805, %v854
  %856 = vmatmul.f32.gmra.mxu0 %v817
  %v857 = vpop.f32.mrf.mxu0
  %v858 = vadd.f32 %v805, %v857
  %859 = vmatmul.f32.gmra.mxu0 %v820
  %v860 = vpop.f32.mrf.mxu0
  %v861 = vadd.f32 %v805, %v860
  %862 = vmatmul.f32.gmra.mxu0 %v823
  %v863 = vpop.f32.mrf.mxu0
  %v864 = vadd.f32 %v805, %v863
  %865 = vmatmul.f32.gmra.mxu0 %v826
  %v866 = vpop.f32.mrf.mxu0
  %v867 = vadd.f32 %v805, %v866
  %868 = vmatmul.f32.gmra.mxu0 %v829
  %v869 = vpop.f32.mrf.mxu0
  %v870 = vadd.f32 %v805, %v869
  %871 = vdwg.mxu0
  %s872 = scalar_lea.vmem %s8, 8
  %v873 = vld [vmem:[%s872] sm:$0xff]
  %s874 = scalar_lea.vmem %s9, 8
  %v875 = vld [vmem:[%s874] sm:$0xff]
  %v877 = vsel %vm188, %v873, 0
  %879 = vmatpush.msra.mxu0 0.0
  %880 = vmatpush.msra.mxu0 0.0
  %881 = vmatpush.msra.mxu0 0.0
  %882 = vmatpush.msra.mxu0 0.0
  %883 = vmatpush.msra.mxu0 0.0
  %884 = vmatpush.msra.mxu0 0.0
  %885 = vmatpush.msra.mxu0 0.0
  %886 = vmatpush.msra.mxu0 0.0
  %887 = vmatpush.msra.mxu0 0.0
  %888 = vmatpush.msra.mxu0 0.0
  %889 = vmatpush.msra.mxu0 0.0
  %890 = vmatpush.msra.mxu0 0.0
  %891 = vmatpush.msra.mxu0 %v802
  %892 = vmatpush.msra.mxu0 %v801
  %893 = vmatpush.msra.mxu0 %v800
  %894 = vmatpush.msra.mxu0 %v799
  %895 = vmatmul.f32.gmra.mxu0 %v877
  %v896 = vpop.f32.mrf.mxu0
  %v897 = vadd.f32 0.0, %v896
  %898 = vdwg.mxu0
  %v899 = vadd.f32 %v849, %v897
  %v900 = vxor.u32 %v899, 2147483648
  %v901 = vmul.f32 %v900, 1.442695
  %v902 = vpow.pop %v901
  %v903 = vadd.f32 %v902, 1.0
  %v904 = vrcp.pop %v903
  %v905 = vmul.f32 %v903, %v904
  %v906 = vsub.f32 1.0, %v905
  %v907 = vmul.f32 %v904, %v906
  %v908 = vadd.f32 %v904, %v907
  %vm909 = vweird.f32 %v903
  %vm910 = vweird.f32 %v904
  %vm911 = vmor %vm909, %vm910
  %v912 = vsel %vm911, %v904, %v908
  %v913 = vand.u32 2147483647, %v903
  %vm914 = vcmp.eq.f32.partialorder %v913, 8.507059e+37
  %v915 = vand.u32 %v903, 2147483648
  %v916 = vor.u32 1.1754944e-38, %v915
  %v917 = vsel %vm914, %v916, %v912
  %v918 = vmul.f32 1.0, %v917
  %v919 = vtanh.pop %v899
  %921 = vrot.lane.b32.xlu0 %v875, 32
  %v922 = vpop.permute.xlu0 %921
  %v924 = vmul.f32 %v918, %v922
  %926 = vrot.lane.b32.xlu0 %v919, 64
  %v927 = vpop.permute.xlu0 %926
  %v929 = vmul.f32 %v918, %v927
  %931 = vrot.lane.b32.xlu0 %v929, 32
  %v932 = vpop.permute.xlu0 %931
  %v934 = vadd.f32 %v924, %v932
  %v935 = vtanh.pop %v934
  %937 = vrot.lane.b32.xlu0 %v935, 64
  %v938 = vpop.permute.xlu0 %937
  %v940 = vmul.f32 %v918, %v938
  %942 = vrot.lane.b32.xlu0 %v940, 32
  %v943 = vpop.permute.xlu0 %942
  %945 = vst.msk [vmem:[#allocation2] sm:$0xff] %vm188, %v943
  %v946 = vsel %vm188, %v943, 0
  %948 = vmatpush.msra.mxu0 0.0
  %949 = vmatpush.msra.mxu0 0.0
  %950 = vmatpush.msra.mxu0 0.0
  %951 = vmatpush.msra.mxu0 0.0
  %952 = vmatpush.msra.mxu0 0.0
  %953 = vmatpush.msra.mxu0 0.0
  %954 = vmatpush.msra.mxu0 0.0
  %955 = vmatpush.msra.mxu0 0.0
  %956 = vmatpush.msra.mxu0 0.0
  %957 = vmatpush.msra.mxu0 0.0
  %958 = vmatpush.msra.mxu0 0.0
  %959 = vmatpush.msra.mxu0 0.0
  %960 = vmatpush.msra.mxu0 %v802
  %961 = vmatpush.msra.mxu0 %v801
  %962 = vmatpush.msra.mxu0 %v800
  %963 = vmatpush.msra.mxu0 %v799
  %964 = vmatmul.f32.gmra.mxu0 %v946
  %v965 = vpop.f32.mrf.mxu0
  %v966 = vadd.f32 0.0, %v965
  %967 = vdwg.mxu0
  %v968 = vadd.f32 %v852, %v966
  %v969 = vxor.u32 %v968, 2147483648
  %v970 = vmul.f32 %v969, 1.442695
  %v971 = vpow.pop %v970
  %v972 = vadd.f32 %v971, 1.0
  %v973 = vrcp.pop %v972
  %v974 = vmul.f32 %v972, %v973
  %v975 = vsub.f32 1.0, %v974
  %v976 = vmul.f32 %v973, %v975
  %v977 = vadd.f32 %v973, %v976
  %vm978 = vweird.f32 %v972
  %vm979 = vweird.f32 %v973
  %vm980 = vmor %vm978, %vm979
  %v981 = vsel %vm980, %v973, %v977
  %v982 = vand.u32 2147483647, %v972
  %vm983 = vcmp.eq.f32.partialorder %v982, 8.507059e+37
  %v984 = vand.u32 %v972, 2147483648
  %v985 = vor.u32 1.1754944e-38, %v984
  %v986 = vsel %vm983, %v985, %v981
  %v987 = vmul.f32 1.0, %v986
  %v988 = vtanh.pop %v968
  %v989 = vmul.f32 %v987, %v934
  %991 = vrot.lane.b32.xlu0 %v988, 64
  %v992 = vpop.permute.xlu0 %991
  %v994 = vmul.f32 %v987, %v992
  %996 = vrot.lane.b32.xlu0 %v994, 32
  %v997 = vpop.permute.xlu0 %996
  %v999 = vadd.f32 %v989, %v997
  %v1000 = vtanh.pop %v999
  %1002 = vrot.lane.b32.xlu0 %v1000, 64
  %v1003 = vpop.permute.xlu0 %1002
  %v1005 = vmul.f32 %v987, %v1003
  %1007 = vrot.lane.b32.xlu0 %v1005, 32
  %v1008 = vpop.permute.xlu0 %1007
  %1010 = vst.msk [vmem:[#allocation2 + $0x8] sm:$0xff] %vm188, %v1008
  %v1011 = vsel %vm188, %v1008, 0
  %1013 = vmatpush.msra.mxu0 0.0
  %1014 = vmatpush.msra.mxu0 0.0
  %1015 = vmatpush.msra.mxu0 0.0
  %1016 = vmatpush.msra.mxu0 0.0
  %1017 = vmatpush.msra.mxu0 0.0
  %1018 = vmatpush.msra.mxu0 0.0
  %1019 = vmatpush.msra.mxu0 0.0
  %1020 = vmatpush.msra.mxu0 0.0
  %1021 = vmatpush.msra.mxu0 0.0
  %1022 = vmatpush.msra.mxu0 0.0
  %1023 = vmatpush.msra.mxu0 0.0
  %1024 = vmatpush.msra.mxu0 0.0
  %1025 = vmatpush.msra.mxu0 %v802
  %1026 = vmatpush.msra.mxu0 %v801
  %1027 = vmatpush.msra.mxu0 %v800
  %1028 = vmatpush.msra.mxu0 %v799
  %1029 = vmatmul.f32.gmra.mxu0 %v1011
  %v1030 = vpop.f32.mrf.mxu0
  %v1031 = vadd.f32 0.0, %v1030
  %1032 = vdwg.mxu0
  %v1033 = vadd.f32 %v855, %v1031
  %v1034 = vxor.u32 %v1033, 2147483648
  %v1035 = vmul.f32 %v1034, 1.442695
  %v1036 = vpow.pop %v1035
  %v1037 = vadd.f32 %v1036, 1.0
  %v1038 = vrcp.pop %v1037
  %v1039 = vmul.f32 %v1037, %v1038
  %v1040 = vsub.f32 1.0, %v1039
  %v1041 = vmul.f32 %v1038, %v1040
  %v1042 = vadd.f32 %v1038, %v1041
  %vm1043 = vweird.f32 %v1037
  %vm1044 = vweird.f32 %v1038
  %vm1045 = vmor %vm1043, %vm1044
  %v1046 = vsel %vm1045, %v1038, %v1042
  %v1047 = vand.u32 2147483647, %v1037
  %vm1048 = vcmp.eq.f32.partialorder %v1047, 8.507059e+37
  %v1049 = vand.u32 %v1037, 2147483648
  %v1050 = vor.u32 1.1754944e-38, %v1049
  %v1051 = vsel %vm1048, %v1050, %v1046
  %v1052 = vmul.f32 1.0, %v1051
  %v1053 = vtanh.pop %v1033
  %v1054 = vmul.f32 %v1052, %v999
  %1056 = vrot.lane.b32.xlu0 %v1053, 64
  %v1057 = vpop.permute.xlu0 %1056
  %v1059 = vmul.f32 %v1052, %v1057
  %1061 = vrot.lane.b32.xlu0 %v1059, 32
  %v1062 = vpop.permute.xlu0 %1061
  %v1064 = vadd.f32 %v1054, %v1062
  %v1065 = vtanh.pop %v1064
  %1067 = vrot.lane.b32.xlu0 %v1065, 64
  %v1068 = vpop.permute.xlu0 %1067
  %v1070 = vmul.f32 %v1052, %v1068
  %1072 = vrot.lane.b32.xlu0 %v1070, 32
  %v1073 = vpop.permute.xlu0 %1072
  %1075 = vst.msk [vmem:[#allocation2 + $0x10] sm:$0xff] %vm188, %v1073
  %v1076 = vsel %vm188, %v1073, 0
  %1078 = vmatpush.msra.mxu0 0.0
  %1079 = vmatpush.msra.mxu0 0.0
  %1080 = vmatpush.msra.mxu0 0.0
  %1081 = vmatpush.msra.mxu0 0.0
  %1082 = vmatpush.msra.mxu0 0.0
  %1083 = vmatpush.msra.mxu0 0.0
  %1084 = vmatpush.msra.mxu0 0.0
  %1085 = vmatpush.msra.mxu0 0.0
  %1086 = vmatpush.msra.mxu0 0.0
  %1087 = vmatpush.msra.mxu0 0.0
  %1088 = vmatpush.msra.mxu0 0.0
  %1089 = vmatpush.msra.mxu0 0.0
  %1090 = vmatpush.msra.mxu0 %v802
  %1091 = vmatpush.msra.mxu0 %v801
  %1092 = vmatpush.msra.mxu0 %v800
  %1093 = vmatpush.msra.mxu0 %v799
  %1094 = vmatmul.f32.gmra.mxu0 %v1076
  %v1095 = vpop.f32.mrf.mxu0
  %v1096 = vadd.f32 0.0, %v1095
  %1097 = vdwg.mxu0
  %v1098 = vadd.f32 %v858, %v1096
  %v1099 = vxor.u32 %v1098, 2147483648
  %v1100 = vmul.f32 %v1099, 1.442695
  %v1101 = vpow.pop %v1100
  %v1102 = vadd.f32 %v1101, 1.0
  %v1103 = vrcp.pop %v1102
  %v1104 = vmul.f32 %v1102, %v1103
  %v1105 = vsub.f32 1.0, %v1104
  %v1106 = vmul.f32 %v1103, %v1105
  %v1107 = vadd.f32 %v1103, %v1106
  %vm1108 = vweird.f32 %v1102
  %vm1109 = vweird.f32 %v1103
  %vm1110 = vmor %vm1108, %vm1109
  %v1111 = vsel %vm1110, %v1103, %v1107
  %v1112 = vand.u32 2147483647, %v1102
  %vm1113 = vcmp.eq.f32.partialorder %v1112, 8.507059e+37
  %v1114 = vand.u32 %v1102, 2147483648
  %v1115 = vor.u32 1.1754944e-38, %v1114
  %v1116 = vsel %vm1113, %v1115, %v1111
  %v1117 = vmul.f32 1.0, %v1116
  %v1118 = vtanh.pop %v1098
  %v1119 = vmul.f32 %v1117, %v1064
  %1121 = vrot.lane.b32.xlu0 %v1118, 64
  %v1122 = vpop.permute.xlu0 %1121
  %v1124 = vmul.f32 %v1117, %v1122
  %1126 = vrot.lane.b32.xlu0 %v1124, 32
  %v1127 = vpop.permute.xlu0 %1126
  %v1129 = vadd.f32 %v1119, %v1127
  %v1130 = vtanh.pop %v1129
  %1132 = vrot.lane.b32.xlu0 %v1130, 64
  %v1133 = vpop.permute.xlu0 %1132
  %v1135 = vmul.f32 %v1117, %v1133
  %1137 = vrot.lane.b32.xlu0 %v1135, 32
  %v1138 = vpop.permute.xlu0 %1137
  %1140 = vst.msk [vmem:[#allocation2 + $0x18] sm:$0xff] %vm188, %v1138
  %v1141 = vsel %vm188, %v1138, 0
  %1143 = vmatpush.msra.mxu0 0.0
  %1144 = vmatpush.msra.mxu0 0.0
  %1145 = vmatpush.msra.mxu0 0.0
  %1146 = vmatpush.msra.mxu0 0.0
  %1147 = vmatpush.msra.mxu0 0.0
  %1148 = vmatpush.msra.mxu0 0.0
  %1149 = vmatpush.msra.mxu0 0.0
  %1150 = vmatpush.msra.mxu0 0.0
  %1151 = vmatpush.msra.mxu0 0.0
  %1152 = vmatpush.msra.mxu0 0.0
  %1153 = vmatpush.msra.mxu0 0.0
  %1154 = vmatpush.msra.mxu0 0.0
  %1155 = vmatpush.msra.mxu0 %v802
  %1156 = vmatpush.msra.mxu0 %v801
  %1157 = vmatpush.msra.mxu0 %v800
  %1158 = vmatpush.msra.mxu0 %v799
  %1159 = vmatmul.f32.gmra.mxu0 %v1141
  %v1160 = vpop.f32.mrf.mxu0
  %v1161 = vadd.f32 0.0, %v1160
  %1162 = vdwg.mxu0
  %v1163 = vadd.f32 %v861, %v1161
  %v1164 = vxor.u32 %v1163, 2147483648
  %v1165 = vmul.f32 %v1164, 1.442695
  %v1166 = vpow.pop %v1165
  %v1167 = vadd.f32 %v1166, 1.0
  %v1168 = vrcp.pop %v1167
  %v1169 = vmul.f32 %v1167, %v1168
  %v1170 = vsub.f32 1.0, %v1169
  %v1171 = vmul.f32 %v1168, %v1170
  %v1172 = vadd.f32 %v1168, %v1171
  %vm1173 = vweird.f32 %v1167
  %vm1174 = vweird.f32 %v1168
  %vm1175 = vmor %vm1173, %vm1174
  %v1176 = vsel %vm1175, %v1168, %v1172
  %v1177 = vand.u32 2147483647, %v1167
  %vm1178 = vcmp.eq.f32.partialorder %v1177, 8.507059e+37
  %v1179 = vand.u32 %v1167, 2147483648
  %v1180 = vor.u32 1.1754944e-38, %v1179
  %v1181 = vsel %vm1178, %v1180, %v1176
  %v1182 = vmul.f32 1.0, %v1181
  %v1183 = vtanh.pop %v1163
  %v1184 = vmul.f32 %v1182, %v1129
  %1186 = vrot.lane.b32.xlu0 %v1183, 64
  %v1187 = vpop.permute.xlu0 %1186
  %v1189 = vmul.f32 %v1182, %v1187
  %1191 = vrot.lane.b32.xlu0 %v1189, 32
  %v1192 = vpop.permute.xlu0 %1191
  %v1194 = vadd.f32 %v1184, %v1192
  %v1195 = vtanh.pop %v1194
  %1197 = vrot.lane.b32.xlu0 %v1195, 64
  %v1198 = vpop.permute.xlu0 %1197
  %v1200 = vmul.f32 %v1182, %v1198
  %1202 = vrot.lane.b32.xlu0 %v1200, 32
  %v1203 = vpop.permute.xlu0 %1202
  %1205 = vst.msk [vmem:[#allocation2 + $0x20] sm:$0xff] %vm188, %v1203
  %v1206 = vsel %vm188, %v1203, 0
  %1208 = vmatpush.msra.mxu0 0.0
  %1209 = vmatpush.msra.mxu0 0.0
  %1210 = vmatpush.msra.mxu0 0.0
  %1211 = vmatpush.msra.mxu0 0.0
  %1212 = vmatpush.msra.mxu0 0.0
  %1213 = vmatpush.msra.mxu0 0.0
  %1214 = vmatpush.msra.mxu0 0.0
  %1215 = vmatpush.msra.mxu0 0.0
  %1216 = vmatpush.msra.mxu0 0.0
  %1217 = vmatpush.msra.mxu0 0.0
  %1218 = vmatpush.msra.mxu0 0.0
  %1219 = vmatpush.msra.mxu0 0.0
  %1220 = vmatpush.msra.mxu0 %v802
  %1221 = vmatpush.msra.mxu0 %v801
  %1222 = vmatpush.msra.mxu0 %v800
  %1223 = vmatpush.msra.mxu0 %v799
  %1224 = vmatmul.f32.gmra.mxu0 %v1206
  %v1225 = vpop.f32.mrf.mxu0
  %v1226 = vadd.f32 0.0, %v1225
  %1227 = vdwg.mxu0
  %v1228 = vadd.f32 %v864, %v1226
  %v1229 = vxor.u32 %v1228, 2147483648
  %v1230 = vmul.f32 %v1229, 1.442695
  %v1231 = vpow.pop %v1230
  %v1232 = vadd.f32 %v1231, 1.0
  %v1233 = vrcp.pop %v1232
  %v1234 = vmul.f32 %v1232, %v1233
  %v1235 = vsub.f32 1.0, %v1234
  %v1236 = vmul.f32 %v1233, %v1235
  %v1237 = vadd.f32 %v1233, %v1236
  %vm1238 = vweird.f32 %v1232
  %vm1239 = vweird.f32 %v1233
  %vm1240 = vmor %vm1238, %vm1239
  %v1241 = vsel %vm1240, %v1233, %v1237
  %v1242 = vand.u32 2147483647, %v1232
  %vm1243 = vcmp.eq.f32.partialorder %v1242, 8.507059e+37
  %v1244 = vand.u32 %v1232, 2147483648
  %v1245 = vor.u32 1.1754944e-38, %v1244
  %v1246 = vsel %vm1243, %v1245, %v1241
  %v1247 = vmul.f32 1.0, %v1246
  %v1248 = vtanh.pop %v1228
  %v1249 = vmul.f32 %v1247, %v1194
  %1251 = vrot.lane.b32.xlu0 %v1248, 64
  %v1252 = vpop.permute.xlu0 %1251
  %v1254 = vmul.f32 %v1247, %v1252
  %1256 = vrot.lane.b32.xlu0 %v1254, 32
  %v1257 = vpop.permute.xlu0 %1256
  %v1259 = vadd.f32 %v1249, %v1257
  %v1260 = vtanh.pop %v1259
  %1262 = vrot.lane.b32.xlu0 %v1260, 64
  %v1263 = vpop.permute.xlu0 %1262
  %v1265 = vmul.f32 %v1247, %v1263
  %1267 = vrot.lane.b32.xlu0 %v1265, 32
  %v1268 = vpop.permute.xlu0 %1267
  %1270 = vst.msk [vmem:[#allocation2 + $0x28] sm:$0xff] %vm188, %v1268
  %v1271 = vsel %vm188, %v1268, 0
  %1273 = vmatpush.msra.mxu0 0.0
  %1274 = vmatpush.msra.mxu0 0.0
  %1275 = vmatpush.msra.mxu0 0.0
  %1276 = vmatpush.msra.mxu0 0.0
  %1277 = vmatpush.msra.mxu0 0.0
  %1278 = vmatpush.msra.mxu0 0.0
  %1279 = vmatpush.msra.mxu0 0.0
  %1280 = vmatpush.msra.mxu0 0.0
  %1281 = vmatpush.msra.mxu0 0.0
  %1282 = vmatpush.msra.mxu0 0.0
  %1283 = vmatpush.msra.mxu0 0.0
  %1284 = vmatpush.msra.mxu0 0.0
  %1285 = vmatpush.msra.mxu0 %v802
  %1286 = vmatpush.msra.mxu0 %v801
  %1287 = vmatpush.msra.mxu0 %v800
  %1288 = vmatpush.msra.mxu0 %v799
  %1289 = vmatmul.f32.gmra.mxu0 %v1271
  %v1290 = vpop.f32.mrf.mxu0
  %v1291 = vadd.f32 0.0, %v1290
  %1292 = vdwg.mxu0
  %v1293 = vadd.f32 %v867, %v1291
  %v1294 = vxor.u32 %v1293, 2147483648
  %v1295 = vmul.f32 %v1294, 1.442695
  %v1296 = vpow.pop %v1295
  %v1297 = vadd.f32 %v1296, 1.0
  %v1298 = vrcp.pop %v1297
  %v1299 = vmul.f32 %v1297, %v1298
  %v1300 = vsub.f32 1.0, %v1299
  %v1301 = vmul.f32 %v1298, %v1300
  %v1302 = vadd.f32 %v1298, %v1301
  %vm1303 = vweird.f32 %v1297
  %vm1304 = vweird.f32 %v1298
  %vm1305 = vmor %vm1303, %vm1304
  %v1306 = vsel %vm1305, %v1298, %v1302
  %v1307 = vand.u32 2147483647, %v1297
  %vm1308 = vcmp.eq.f32.partialorder %v1307, 8.507059e+37
  %v1309 = vand.u32 %v1297, 2147483648
  %v1310 = vor.u32 1.1754944e-38, %v1309
  %v1311 = vsel %vm1308, %v1310, %v1306
  %v1312 = vmul.f32 1.0, %v1311
  %v1313 = vtanh.pop %v1293
  %v1314 = vmul.f32 %v1312, %v1259
  %1316 = vrot.lane.b32.xlu0 %v1313, 64
  %v1317 = vpop.permute.xlu0 %1316
  %v1319 = vmul.f32 %v1312, %v1317
  %1321 = vrot.lane.b32.xlu0 %v1319, 32
  %v1322 = vpop.permute.xlu0 %1321
  %v1324 = vadd.f32 %v1314, %v1322
  %v1325 = vtanh.pop %v1324
  %1327 = vrot.lane.b32.xlu0 %v1325, 64
  %v1328 = vpop.permute.xlu0 %1327
  %v1330 = vmul.f32 %v1312, %v1328
  %1332 = vrot.lane.b32.xlu0 %v1330, 32
  %v1333 = vpop.permute.xlu0 %1332
  %1335 = vst.msk [vmem:[#allocation2 + $0x30] sm:$0xff] %vm188, %v1333
  %v1336 = vsel %vm188, %v1333, 0
  %1338 = vmatpush.msra.mxu0 0.0
  %1339 = vmatpush.msra.mxu0 0.0
  %1340 = vmatpush.msra.mxu0 0.0
  %1341 = vmatpush.msra.mxu0 0.0
  %1342 = vmatpush.msra.mxu0 0.0
  %1343 = vmatpush.msra.mxu0 0.0
  %1344 = vmatpush.msra.mxu0 0.0
  %1345 = vmatpush.msra.mxu0 0.0
  %1346 = vmatpush.msra.mxu0 0.0
  %1347 = vmatpush.msra.mxu0 0.0
  %1348 = vmatpush.msra.mxu0 0.0
  %1349 = vmatpush.msra.mxu0 0.0
  %1350 = vmatpush.msra.mxu0 %v802
  %1351 = vmatpush.msra.mxu0 %v801
  %1352 = vmatpush.msra.mxu0 %v800
  %1353 = vmatpush.msra.mxu0 %v799
  %1354 = vmatmul.f32.gmra.mxu0 %v1336
  %v1355 = vpop.f32.mrf.mxu0
  %v1356 = vadd.f32 0.0, %v1355
  %1357 = vdwg.mxu0
  %v1358 = vadd.f32 %v870, %v1356
  %v1359 = vxor.u32 %v1358, 2147483648
  %v1360 = vmul.f32 %v1359, 1.442695
  %v1361 = vpow.pop %v1360
  %v1362 = vadd.f32 %v1361, 1.0
  %v1363 = vrcp.pop %v1362
  %v1364 = vmul.f32 %v1362, %v1363
  %v1365 = vsub.f32 1.0, %v1364
  %v1366 = vmul.f32 %v1363, %v1365
  %v1367 = vadd.f32 %v1363, %v1366
  %vm1368 = vweird.f32 %v1362
  %vm1369 = vweird.f32 %v1363
  %vm1370 = vmor %vm1368, %vm1369
  %v1371 = vsel %vm1370, %v1363, %v1367
  %v1372 = vand.u32 2147483647, %v1362
  %vm1373 = vcmp.eq.f32.partialorder %v1372, 8.507059e+37
  %v1374 = vand.u32 %v1362, 2147483648
  %v1375 = vor.u32 1.1754944e-38, %v1374
  %v1376 = vsel %vm1373, %v1375, %v1371
  %v1377 = vmul.f32 1.0, %v1376
  %v1378 = vtanh.pop %v1358
  %v1379 = vmul.f32 %v1377, %v1324
  %1381 = vrot.lane.b32.xlu0 %v1378, 64
  %v1382 = vpop.permute.xlu0 %1381
  %v1384 = vmul.f32 %v1377, %v1382
  %1386 = vrot.lane.b32.xlu0 %v1384, 32
  %v1387 = vpop.permute.xlu0 %1386
  %v1389 = vadd.f32 %v1379, %v1387
  %v1390 = vtanh.pop %v1389
  %1392 = vrot.lane.b32.xlu0 %v1390, 64
  %v1393 = vpop.permute.xlu0 %1392
  %v1395 = vmul.f32 %v1377, %v1393
  %1397 = vrot.lane.b32.xlu0 %v1395, 32
  %v1398 = vpop.permute.xlu0 %1397
  %1400 = vst.msk [vmem:[#allocation2 + $0x38] sm:$0xff] %vm188, %v1398
  %s1401 = scalar_lea.vmem %s13, 8
  %1402 = vst.msk [vmem:[%s1401] sm:$0xff] %vm188, %v1398
  %1404 = vrot.lane.b32.xlu0 %v1389, 96
  %v1405 = vpop.permute.xlu0 %1404
  %s1407 = scalar_lea.vmem %s14, 8
  %1408 = vst.msk [vmem:[%s1407] sm:$0xff] %vm188, %v1405
  %v1409 = vld [vmem:[#allocation2] sm:$0xff]
  %v1410 = vld [vmem:[#allocation2 + $0x8] sm:$0xff]
  %v1411 = vld [vmem:[#allocation2 + $0x10] sm:$0xff]
  %v1412 = vld [vmem:[#allocation2 + $0x18] sm:$0xff]
  %v1413 = vld [vmem:[#allocation2 + $0x20] sm:$0xff]
  %v1414 = vld [vmem:[#allocation2 + $0x28] sm:$0xff]
  %v1415 = vld [vmem:[#allocation2 + $0x30] sm:$0xff]
  %v1416 = vld [vmem:[#allocation2 + $0x38] sm:$0xff]
  %v1417 = vld [vmem:[%s10] sm:$0xff]
  %v1418 = vld [vmem:[%s10 + $0x8] sm:$0xff]
  %v1419 = vld [vmem:[%s10 + $0x10] sm:$0xff]
  %v1420 = vld [vmem:[%s10 + $0x18] sm:$0xff]
  %v1421 = vld [vmem:[%s11] sm:$0x1]
  %v1423 = vperm.slane %v1421, 0
  %v1426 = vsel %vm188, %v1409, 0
  %v1429 = vsel %vm188, %v1410, 0
  %v1432 = vsel %vm188, %v1411, 0
  %v1435 = vsel %vm188, %v1412, 0
  %v1438 = vsel %vm188, %v1413, 0
  %v1441 = vsel %vm188, %v1414, 0
  %v1444 = vsel %vm188, %v1415, 0
  %v1447 = vsel %vm188, %v1416, 0
  %1449 = vmatpush.msra.mxu0 0.0
  %1450 = vmatpush.msra.mxu0 0.0
  %1451 = vmatpush.msra.mxu0 0.0
  %1452 = vmatpush.msra.mxu0 0.0
  %1453 = vmatpush.msra.mxu0 0.0
  %1454 = vmatpush.msra.mxu0 0.0
  %1455 = vmatpush.msra.mxu0 0.0
  %1456 = vmatpush.msra.mxu0 0.0
  %1457 = vmatpush.msra.mxu0 0.0
  %1458 = vmatpush.msra.mxu0 0.0
  %1459 = vmatpush.msra.mxu0 0.0
  %1460 = vmatpush.msra.mxu0 0.0
  %1461 = vmatpush.msra.mxu0 %v1420
  %1462 = vmatpush.msra.mxu0 %v1419
  %1463 = vmatpush.msra.mxu0 %v1418
  %1464 = vmatpush.msra.mxu0 %v1417
  %1465 = vmatmul.f32.gmra.mxu0 %v1426
  %v1466 = vpop.f32.mrf.mxu0
  %v1467 = vadd.f32 %v1423, %v1466
  %1468 = vmatmul.f32.gmra.mxu0 %v1429
  %v1469 = vpop.f32.mrf.mxu0
  %v1470 = vadd.f32 %v1423, %v1469
  %1471 = vmatmul.f32.gmra.mxu0 %v1432
  %v1472 = vpop.f32.mrf.mxu0
  %v1473 = vadd.f32 %v1423, %v1472
  %1474 = vmatmul.f32.gmra.mxu0 %v1435
  %v1475 = vpop.f32.mrf.mxu0
  %v1476 = vadd.f32 %v1423, %v1475
  %1477 = vmatmul.f32.gmra.mxu0 %v1438
  %v1478 = vpop.f32.mrf.mxu0
  %v1479 = vadd.f32 %v1423, %v1478
  %1480 = vmatmul.f32.gmra.mxu0 %v1441
  %v1481 = vpop.f32.mrf.mxu0
  %v1482 = vadd.f32 %v1423, %v1481
  %1483 = vmatmul.f32.gmra.mxu0 %v1444
  %v1484 = vpop.f32.mrf.mxu0
  %v1485 = vadd.f32 %v1423, %v1484
  %1486 = vmatmul.f32.gmra.mxu0 %v1447
  %v1487 = vpop.f32.mrf.mxu0
  %v1488 = vadd.f32 %v1423, %v1487
  %1489 = vdwg.mxu0
  %1490 = vst [vmem:[%s12] sm:$0xff] %v1467
  %1491 = vst [vmem:[%s12 + $0x8] sm:$0xff] %v1470
  %1492 = vst [vmem:[%s12 + $0x10] sm:$0xff] %v1473
  %1493 = vst [vmem:[%s12 + $0x18] sm:$0xff] %v1476
  %1494 = vst [vmem:[%s12 + $0x20] sm:$0xff] %v1479
  %1495 = vst [vmem:[%s12 + $0x28] sm:$0xff] %v1482
  %1496 = vst [vmem:[%s12 + $0x30] sm:$0xff] %v1485
  %1497 = vst [vmem:[%s12 + $0x38] sm:$0xff] %v1488
  // Predicated region
  $region50: #{lstm_lm_forward.1} parent=0 // pred_check
    _
  $region51: #{lstm_lm_forward.1} parent=0 // pred_check_branch
    %1499 = sbr.rel (0) target = $region53
  $region52: #{lstm_lm_forward.1} parent=0 // pred_region
    _
  $region53: #{lstm_lm_forward.1} parent=0 // pred_fallthru
    _
  // Predicated region
  $region54: #{lstm_lm_forward.1} parent=0 // pred_check
    _
  $region55: #{lstm_lm_forward.1} parent=0 // pred_check_branch
    %1501 = sbr.rel (0) target = $region57
  $region56: #{lstm_lm_forward.1} parent=0 // pred_region
    _
  $region57: #{lstm_lm_forward.1} parent=0 // pred_fallthru
    _
  // Predicated region
  $region58: #{lstm_lm_forward.1} parent=0 // pred_check
    _
  $region59: #{lstm_lm_forward.1} parent=0 // pred_check_branch
    %1503 = sbr.rel (0) target = $region61
  $region60: #{lstm_lm_forward.1} parent=0 // pred_region
    _
  $region61: #{lstm_lm_forward.1} parent=0 // pred_fallthru
    _
  // Predicated region
  $region62: #{lstm_lm_forward.1} parent=0 // pred_check
    _
  $region63: #{lstm_lm_forward.1} parent=0 // pred_check_branch
    %1505 = sbr.rel (0) target = $region65
  $region64: #{lstm_lm_forward.1} parent=0 // pred_region
    _
  $region65: #{lstm_lm_forward.1} parent=0 // pred_fallthru
    _
  // Predicated region
  $region66: #{lstm_lm_forward.1} parent=0 // pred_check
    _
  $region67: #{lstm_lm_forward.1} parent=0 // pred_check_branch
    %1507 = sbr.rel (0) target = $region69
  $region68: #{lstm_lm_forward.1} parent=0 // pred_region
    _
  $region69: #{lstm_lm_forward.1} parent=0 // pred_fallthru
    _
  // Predicated region
  $region70: #{lstm_lm_forward.1} parent=0 // pred_check
    _
  $region71: #{lstm_lm_forward.1} parent=0 // pred_check_branch
    %1509 = sbr.rel (0) target = $region73
  $region72: #{lstm_lm_forward.1} parent=0 // pred_region
    _
  $region73: #{lstm_lm_forward.1} parent=0 // pred_fallthru
    _

</llo_original>
